<compile_context>
chip_gen: v6e
topology: v6e:2x2x1
jax: 0.10.0
libtpu: 0.0.40
codegen_flags: <defaults>
</compile_context>

<pallas_src>
import functools

import jax
import jax.numpy as jnp
from jax.experimental import pallas as pl
from jax.experimental.pallas import tpu as pltpu

LN_EPS = 1e-5


def dp_kernel(x_ref,
              w1_ref, b1_ref, g1_ref, be1_ref,
              w2_ref, b2_ref, g2_ref, be2_ref,
              wl_ref, bl_ref,
              o_ref, *, t_pad, t_real):
    x = x_ref[0]                                # (M, C) f32, M = B_blk * T_pad
    M = x.shape[0]
    mm_dtype = w1_ref.dtype                     # MXU operand dtype (bf16/f32)

    # Halo masks built in-kernel (scalar/VPU slack, no DMAed (M,1) inputs):
    # the conv must not read across t == 0 / t == t_real - 1, which both
    # reproduces Conv1d zero padding and blocks cross-sequence leakage inside
    # a batch group (and from zero-padded batch/time rows).
    t_idx = jax.lax.broadcasted_iota(jnp.int32, (M, 1), 0) % t_pad
    not_first = t_idx != 0
    not_last = t_idx != (t_real - 1)

    def conv_ln_relu(h, w_ref, b_ref, g_ref, be_ref):
        # Conv1d(k=3, pad=1) as three accumulating (M,C)@(C,C) MXU matmuls;
        # no (M, 3C) slab is ever materialized.
        h_prev = jnp.where(not_first, pltpu.roll(h, 1, 0), 0.0)      # x[t-1]
        h_next = jnp.where(not_last, pltpu.roll(h, M - 1, 0), 0.0)   # x[t+1]
        y = jnp.dot(h_prev.astype(mm_dtype), w_ref[0],
                    preferred_element_type=jnp.float32)
        y += jnp.dot(h.astype(mm_dtype), w_ref[1],
                     preferred_element_type=jnp.float32)
        y += jnp.dot(h_next.astype(mm_dtype), w_ref[2],
                     preferred_element_type=jnp.float32)
        y += b_ref[...]
        # LayerNorm(C) (biased variance, nn.LayerNorm semantics) + ReLU, f32.
        mean = jnp.mean(y, axis=-1, keepdims=True)
        cen = y - mean
        var = jnp.mean(cen * cen, axis=-1, keepdims=True)
        yn = cen * jax.lax.rsqrt(var + LN_EPS)
        return jnp.maximum(yn * g_ref[...] + be_ref[...], 0.0)

    h1 = conv_ln_relu(x, w1_ref, b1_ref, g1_ref, be1_ref)
    h2 = conv_ln_relu(h1, w2_ref, b2_ref, g2_ref, be2_ref)

    # Linear(C -> 1) as an NT matmul -> lane-dense (1, M) row, + bias, ReLU.
    out_row = jax.lax.dot_general(
        wl_ref[...], h2, (((1,), (1,)), ((), ())),
        preferred_element_type=jnp.float32)               # (1, M)
    o_ref[0] = jnp.maximum(out_row + bl_ref[0, 0], 0.0)


def _round_up(n, m):
    return ((n + m - 1) // m) * m


def _plan_blocks(B, T, *, target_rows=1024, max_rows=2048):
    """Pick (B_blk, G, B_pad, T_pad).

    Targets M = B_blk * T_pad around target_rows, caps it at max_rows (v7x
    64 MiB VMEM), keeps G >= 2 whenever B >= 2 (v7x dual TensorCores), and
    pads B so prime / non-divisible batches never collapse into one block.
    """
    T_pad = _round_up(T, 8)                    # sublane alignment
    if T_pad >= max_rows:
        b_blk = 1   # TODO(synk): T-tile grid axis with 1-row halo for long T
    else:
        b_blk = max(1, min(B, pl.cdiv(target_rows, T_pad)))
        b_blk = min(b_blk, max(1, max_rows // T_pad))
    if B >= 2 and pl.cdiv(B, b_blk) < 2:       # guarantee >= 2 grid steps
        b_blk = pl.cdiv(B, 2)
    G = pl.cdiv(B, b_blk)
    b_blk = pl.cdiv(B, G)                      # minimize batch padding
    B_pad = G * b_blk
    return b_blk, G, B_pad, T_pad


def duration_predictor(x, params, *, mm_dtype=jnp.bfloat16,
                       target_rows=1024, max_rows=2048):
    """x: (B, T, 256) f32 -> (B, T) f32 (module output after .squeeze())."""
    B, T, C = x.shape
    (w1, b1, g1, be1, w2, b2, g2, be2, wl, bl) = params

    B_blk, G, B_pad, T_pad = _plan_blocks(
        B, T, target_rows=target_rows, max_rows=max_rows)
    M = B_blk * T_pad

    # Zero-pad batch / time in the wrapper (cheap XLA op).  Padded rows
    # compute garbage that is sliced away; the in-kernel halo masks keep them
    # from leaking into real rows.
    x_pad = jnp.pad(x, ((0, B_pad - B), (0, T_pad - T), (0, 0)))
    x_g = x_pad.reshape(G, M, C)

    # Conv weights stay (3, C_in, C_out): tap k pairs with x[t + k - 1].
    w1m = w1.astype(mm_dtype)
    w2m = w2.astype(mm_dtype)

    rep = lambda shape: pl.BlockSpec(shape, lambda g, s=shape: (0,) * len(s))

    kernel = functools.partial(dp_kernel, t_pad=T_pad, t_real=T)
    out = pl.pallas_call(
        kernel,
        out_shape=jax.ShapeDtypeStruct((G, 1, M), jnp.float32),
        grid=(G,),
        in_specs=[
            pl.BlockSpec((1, M, C), lambda g: (g, 0, 0)),            # activations
            rep((3, C, C)), rep((1, C)), rep((1, C)), rep((1, C)),   # conv1 / LN1
            rep((3, C, C)), rep((1, C)), rep((1, C)), rep((1, C)),   # conv2 / LN2
            rep((1, C)),                                             # linear weight
            pl.BlockSpec(memory_space=pltpu.MemorySpace.SMEM),       # linear bias
        ],
        out_specs=pl.BlockSpec((1, 1, M), lambda g: (g, 0, 0)),      # lane-dense
        compiler_params=pltpu.CompilerParams(
            dimension_semantics=("parallel",),
            vmem_limit_bytes=32 * 1024 * 1024),
    )(x_g, w1m, b1, g1, be1, w2m, b2, g2, be2, wl, bl)

    return out.reshape(B_pad, T_pad)[:B, :T]


def ref_forward(x, params, *, mm_dtype=jnp.bfloat16):
    """Pure-JAX reference of the PyTorch forward (eval mode), with matmul
    operands rounded to mm_dtype to mirror the MXU operand precision."""
    (w1, b1, g1, be1, w2, b2, g2, be2, wl, bl) = params
    q = lambda a: a.astype(mm_dtype).astype(jnp.float32)

    def block(h, w, b, g, be):
        zeros = jnp.zeros((h.shape[0], 1, h.shape[2]), h.dtype)
        h_prev = jnp.concatenate([zeros, h[:, :-1, :]], axis=1)
        h_next = jnp.concatenate([h[:, 1:, :], zeros], axis=1)
        y = jnp.einsum("btc,cd->btd", q(h_prev), q(w[0]))
        y = y + jnp.einsum("btc,cd->btd", q(h), q(w[1]))
        y = y + jnp.einsum("btc,cd->btd", q(h_next), q(w[2]))
        y = y + b[0]
        mean = jnp.mean(y, axis=-1, keepdims=True)
        var = jnp.mean((y - mean) ** 2, axis=-1, keepdims=True)
        yn = (y - mean) * jax.lax.rsqrt(var + LN_EPS)
        return jnp.maximum(yn * g[0] + be[0], 0.0)

    h = block(x, w1, b1, g1, be1)
    h = block(h, w2, b2, g2, be2)
    out = jnp.sum(h * wl[0], axis=-1) + bl[0, 0]
    return jnp.maximum(out, 0.0)


def make_params(key, C=256):
    ks = jax.random.split(key, 6)
    scale = 0.05
    # Conv weights stored as (k=3, C_in, C_out) = transposed PyTorch (out,in,k).
    w1 = scale * jax.random.normal(ks[0], (3, C, C), jnp.float32)
    b1 = scale * jax.random.normal(ks[1], (1, C), jnp.float32)
    g1 = jnp.ones((1, C), jnp.float32)
    be1 = jnp.zeros((1, C), jnp.float32)
    w2 = scale * jax.random.normal(ks[2], (3, C, C), jnp.float32)
    b2 = scale * jax.random.normal(ks[3], (1, C), jnp.float32)
    g2 = jnp.ones((1, C), jnp.float32)
    be2 = jnp.zeros((1, C), jnp.float32)
    wl = scale * jax.random.normal(ks[4], (1, C), jnp.float32)  # Linear (1,256)
    bl = scale * jax.random.normal(ks[5], (1, 1), jnp.float32)  # Linear bias
    return (w1, b1, g1, be1, w2, b2, g2, be2, wl, bl)


if __name__ == "__main__":
    key = jax.random.PRNGKey(0)
    k_x, k_x2, k_p = jax.random.split(key, 3)

    C = 256                      # fixed by the module definition
    params = make_params(k_p, C)

    # Case 1: tiny, evenly divisible shapes.
    B, T = 2, 8
    x = jax.random.normal(k_x, (B, T, C), jnp.float32)
    out = jax.block_until_ready(duration_predictor(x, params))
    ref = ref_forward(x, params)
    assert out.shape == (B, T), out.shape
    err = float(jnp.max(jnp.abs(out - ref)))
    assert err < 3e-3, f"case1 max abs err {err}"

    # Case 2: non-divisible B / T exercises the batch + time padding path.
    B2, T2 = 3, 13
    x2 = jax.random.normal(k_x2, (B2, T2, C), jnp.float32)
    out2 = jax.block_until_ready(duration_predictor(x2, params))
    ref2 = ref_forward(x2, params)
    assert out2.shape == (B2, T2), out2.shape
    err2 = float(jnp.max(jnp.abs(out2 - ref2)))
    assert err2 < 3e-3, f"case2 max abs err {err2}"

    print("KERNEL_OK")
</pallas_src>

<mosaic_0001>
module attributes {stable_mosaic.version = 11 : i64} {
  func.func @dp_kernel(%arg0: i32, %arg1: memref<1x8x256xf32, #tpu.memory_space<vmem>>, %arg2: memref<3x256x256xbf16, #tpu.memory_space<vmem>>, %arg3: memref<1x256xf32, #tpu.memory_space<vmem>>, %arg4: memref<1x256xf32, #tpu.memory_space<vmem>>, %arg5: memref<1x256xf32, #tpu.memory_space<vmem>>, %arg6: memref<3x256x256xbf16, #tpu.memory_space<vmem>>, %arg7: memref<1x256xf32, #tpu.memory_space<vmem>>, %arg8: memref<1x256xf32, #tpu.memory_space<vmem>>, %arg9: memref<1x256xf32, #tpu.memory_space<vmem>>, %arg10: memref<1x256xf32, #tpu.memory_space<vmem>>, %arg11: memref<1x1xf32, #tpu.memory_space<smem>>, %arg12: memref<1x1x8xf32, #tpu.memory_space<vmem>>) attributes {dimension_semantics = [#tpu.dimension_semantics<parallel>], iteration_bounds = array<i64: 2>, scalar_prefetch = 0 : i64, scratch_operands = 0 : i64, tpu.core_type = #tpu.core_type<tc>, window_params = [{transform_indices = @transform_0, window_bounds = array<i64: 1, 8, 256>}, {pipeline_mode = #tpu.pipeline_mode<synchronous>, transform_indices = @transform_1, window_bounds = array<i64: 3, 256, 256>}, {pipeline_mode = #tpu.pipeline_mode<synchronous>, transform_indices = @transform_2, window_bounds = array<i64: 1, 256>}, {pipeline_mode = #tpu.pipeline_mode<synchronous>, transform_indices = @transform_3, window_bounds = array<i64: 1, 256>}, {pipeline_mode = #tpu.pipeline_mode<synchronous>, transform_indices = @transform_4, window_bounds = array<i64: 1, 256>}, {pipeline_mode = #tpu.pipeline_mode<synchronous>, transform_indices = @transform_5, window_bounds = array<i64: 3, 256, 256>}, {pipeline_mode = #tpu.pipeline_mode<synchronous>, transform_indices = @transform_6, window_bounds = array<i64: 1, 256>}, {pipeline_mode = #tpu.pipeline_mode<synchronous>, transform_indices = @transform_7, window_bounds = array<i64: 1, 256>}, {pipeline_mode = #tpu.pipeline_mode<synchronous>, transform_indices = @transform_8, window_bounds = array<i64: 1, 256>}, {pipeline_mode = #tpu.pipeline_mode<synchronous>, transform_indices = @transform_9, window_bounds = array<i64: 1, 256>}, {transform_indices = @transform_10, window_bounds = array<i64: 1, 1>}, {transform_indices = @transform_11, window_bounds = array<i64: 1, 1, 8>}]} {
    %c0 = arith.constant 0 : index
    %c0_0 = arith.constant 0 : index
    %c0_1 = arith.constant 0 : index
    %0 = vector.load %arg1[%c0, %c0_0, %c0_1] : memref<1x8x256xf32, #tpu.memory_space<vmem>>, vector<1x8x256xf32>
    %1 = vector.shape_cast %0 : vector<1x8x256xf32> to vector<8x256xf32>
    %2 = tpu.iota {dimensions = array<i32: 0>} : vector<8x1xi32>
    %c8_i32 = arith.constant 8 : i32
    %c0_i32 = arith.constant 0 : i32
    %3 = arith.cmpi eq, %c8_i32, %c0_i32 : i32
    %c1_i32 = arith.constant 1 : i32
    %4 = arith.select %3, %c1_i32, %c8_i32 : i32
    %5 = vector.broadcast %4 : i32 to vector<8x1xi32>
    %6 = arith.remsi %2, %5 : vector<8x1xi32>
    %c0_i32_2 = arith.constant 0 : i32
    %7 = vector.broadcast %c0_i32_2 : i32 to vector<8x1xi32>
    %8 = arith.cmpi ne, %6, %7 : vector<8x1xi32>
    %c0_i32_3 = arith.constant 0 : i32
    %9 = vector.broadcast %c0_i32_3 : i32 to vector<8x1xi32>
    %10 = arith.cmpi slt, %6, %9 : vector<8x1xi32>
    %c0_i32_4 = arith.constant 0 : i32
    %11 = arith.cmpi slt, %4, %c0_i32_4 : i32
    %12 = vector.broadcast %11 : i1 to vector<8x1xi1>
    %13 = vector.broadcast %12 : vector<8x1xi1> to vector<8x1xi1>
    %14 = arith.xori %10, %13 : vector<8x1xi1>
    %15 = arith.andi %14, %8 : vector<8x1xi1>
    %16 = vector.broadcast %4 : i32 to vector<8x1xi32>
    %17 = arith.addi %6, %16 : vector<8x1xi32>
    %18 = arith.select %15, %17, %6 : vector<8x1xi1>, vector<8x1xi32>
    %c0_i32_5 = arith.constant 0 : i32
    %19 = vector.broadcast %c0_i32_5 : i32 to vector<8x1xi32>
    %20 = arith.cmpi ne, %18, %19 : vector<8x1xi32>
    %c7_i32 = arith.constant 7 : i32
    %21 = vector.broadcast %c7_i32 : i32 to vector<8x1xi32>
    %22 = arith.cmpi ne, %18, %21 : vector<8x1xi32>
    %c1_i32_6 = arith.constant 1 : i32
    %23 = tpu.dynamic_rotate %1 by %c1_i32_6 dim 0 : vector<8x256xf32>, i32 -> vector<8x256xf32>
    %cst = arith.constant 0.000000e+00 : f32
    %24 = vector.shape_cast %20 : vector<8x1xi1> to vector<8x1xi1>
    %25 = vector.broadcast %24 : vector<8x1xi1> to vector<8x256xi1>
    %26 = vector.broadcast %cst : f32 to vector<8x256xf32>
    %27 = arith.select %25, %23, %26 : vector<8x256xi1>, vector<8x256xf32>
    %c7_i32_7 = arith.constant 7 : i32
    %28 = tpu.dynamic_rotate %1 by %c7_i32_7 dim 0 : vector<8x256xf32>, i32 -> vector<8x256xf32>
    %cst_8 = arith.constant 0.000000e+00 : f32
    %29 = vector.shape_cast %22 : vector<8x1xi1> to vector<8x1xi1>
    %30 = vector.broadcast %29 : vector<8x1xi1> to vector<8x256xi1>
    %31 = vector.broadcast %cst_8 : f32 to vector<8x256xf32>
    %32 = arith.select %30, %28, %31 : vector<8x256xi1>, vector<8x256xf32>
    %33 = arith.truncf %27 : vector<8x256xf32> to vector<8x256xbf16>
    %c0_9 = arith.constant 0 : index
    %c0_10 = arith.constant 0 : index
    %c0_11 = arith.constant 0 : index
    %34 = vector.load %arg2[%c0_9, %c0_10, %c0_11] : memref<3x256x256xbf16, #tpu.memory_space<vmem>>, vector<1x256x256xbf16>
    %35 = vector.shape_cast %34 : vector<1x256x256xbf16> to vector<256x256xbf16>
    %cst_12 = arith.constant dense<0.000000e+00> : vector<8x256xf32>
    %36 = tpu.matmul %33, %35, %cst_12 {dimension_numbers = #tpu.dot_dimension_numbers<[1], [0], [0], [1], [0, 0, 1, 1], [], []>} : vector<8x256xbf16>, vector<256x256xbf16>, vector<8x256xf32> -> vector<8x256xf32>
    %37 = arith.truncf %1 : vector<8x256xf32> to vector<8x256xbf16>
    %c1 = arith.constant 1 : index
    %c0_13 = arith.constant 0 : index
    %c0_14 = arith.constant 0 : index
    %38 = vector.load %arg2[%c1, %c0_13, %c0_14] : memref<3x256x256xbf16, #tpu.memory_space<vmem>>, vector<1x256x256xbf16>
    %39 = vector.shape_cast %38 : vector<1x256x256xbf16> to vector<256x256xbf16>
    %cst_15 = arith.constant dense<0.000000e+00> : vector<8x256xf32>
    %40 = tpu.matmul %37, %39, %cst_15 {dimension_numbers = #tpu.dot_dimension_numbers<[1], [0], [0], [1], [0, 0, 1, 1], [], []>} : vector<8x256xbf16>, vector<256x256xbf16>, vector<8x256xf32> -> vector<8x256xf32>
    %41 = arith.addf %36, %40 : vector<8x256xf32>
    %42 = arith.truncf %32 : vector<8x256xf32> to vector<8x256xbf16>
    %c2 = arith.constant 2 : index
    %c0_16 = arith.constant 0 : index
    %c0_17 = arith.constant 0 : index
    %43 = vector.load %arg2[%c2, %c0_16, %c0_17] : memref<3x256x256xbf16, #tpu.memory_space<vmem>>, vector<1x256x256xbf16>
    %44 = vector.shape_cast %43 : vector<1x256x256xbf16> to vector<256x256xbf16>
    %cst_18 = arith.constant dense<0.000000e+00> : vector<8x256xf32>
    %45 = tpu.matmul %42, %44, %cst_18 {dimension_numbers = #tpu.dot_dimension_numbers<[1], [0], [0], [1], [0, 0, 1, 1], [], []>} : vector<8x256xbf16>, vector<256x256xbf16>, vector<8x256xf32> -> vector<8x256xf32>
    %46 = arith.addf %41, %45 : vector<8x256xf32>
    %c0_19 = arith.constant 0 : index
    %c0_20 = arith.constant 0 : index
    %47 = vector.load %arg3[%c0_19, %c0_20] : memref<1x256xf32, #tpu.memory_space<vmem>>, vector<1x256xf32>
    %48 = vector.broadcast %47 : vector<1x256xf32> to vector<8x256xf32>
    %49 = arith.addf %46, %48 : vector<8x256xf32>
    %cst_21 = arith.constant dense<0.000000e+00> : vector<8xf32>
    %50 = vector.multi_reduction <add>, %49, %cst_21 [1] : vector<8x256xf32> to vector<8xf32>
    %51 = vector.shape_cast %50 : vector<8xf32> to vector<8x1xf32>
    %cst_22 = arith.constant 2.560000e+02 : f32
    %52 = vector.broadcast %cst_22 : f32 to vector<8x1xf32>
    %53 = arith.divf %51, %52 : vector<8x1xf32>
    %54 = vector.broadcast %53 : vector<8x1xf32> to vector<8x256xf32>
    %55 = arith.subf %49, %54 : vector<8x256xf32>
    %56 = arith.mulf %55, %55 : vector<8x256xf32>
    %cst_23 = arith.constant dense<0.000000e+00> : vector<8xf32>
    %57 = vector.multi_reduction <add>, %56, %cst_23 [1] : vector<8x256xf32> to vector<8xf32>
    %58 = vector.shape_cast %57 : vector<8xf32> to vector<8x1xf32>
    %cst_24 = arith.constant 2.560000e+02 : f32
    %59 = vector.broadcast %cst_24 : f32 to vector<8x1xf32>
    %60 = arith.divf %58, %59 : vector<8x1xf32>
    %cst_25 = arith.constant 9.99999974E-6 : f32
    %61 = vector.broadcast %cst_25 : f32 to vector<8x1xf32>
    %62 = arith.addf %60, %61 : vector<8x1xf32>
    %63 = math.rsqrt %62 : vector<8x1xf32>
    %64 = vector.broadcast %63 : vector<8x1xf32> to vector<8x256xf32>
    %65 = arith.mulf %55, %64 : vector<8x256xf32>
    %c0_26 = arith.constant 0 : index
    %c0_27 = arith.constant 0 : index
    %66 = vector.load %arg4[%c0_26, %c0_27] : memref<1x256xf32, #tpu.memory_space<vmem>>, vector<1x256xf32>
    %67 = vector.broadcast %66 : vector<1x256xf32> to vector<8x256xf32>
    %68 = arith.mulf %65, %67 : vector<8x256xf32>
    %c0_28 = arith.constant 0 : index
    %c0_29 = arith.constant 0 : index
    %69 = vector.load %arg5[%c0_28, %c0_29] : memref<1x256xf32, #tpu.memory_space<vmem>>, vector<1x256xf32>
    %70 = vector.broadcast %69 : vector<1x256xf32> to vector<8x256xf32>
    %71 = arith.addf %68, %70 : vector<8x256xf32>
    %cst_30 = arith.constant 0.000000e+00 : f32
    %72 = vector.broadcast %cst_30 : f32 to vector<8x256xf32>
    %73 = arith.maximumf %71, %72 : vector<8x256xf32>
    %c1_i32_31 = arith.constant 1 : i32
    %74 = tpu.dynamic_rotate %73 by %c1_i32_31 dim 0 : vector<8x256xf32>, i32 -> vector<8x256xf32>
    %cst_32 = arith.constant 0.000000e+00 : f32
    %75 = vector.shape_cast %20 : vector<8x1xi1> to vector<8x1xi1>
    %76 = vector.broadcast %75 : vector<8x1xi1> to vector<8x256xi1>
    %77 = vector.broadcast %cst_32 : f32 to vector<8x256xf32>
    %78 = arith.select %76, %74, %77 : vector<8x256xi1>, vector<8x256xf32>
    %c7_i32_33 = arith.constant 7 : i32
    %79 = tpu.dynamic_rotate %73 by %c7_i32_33 dim 0 : vector<8x256xf32>, i32 -> vector<8x256xf32>
    %cst_34 = arith.constant 0.000000e+00 : f32
    %80 = vector.shape_cast %22 : vector<8x1xi1> to vector<8x1xi1>
    %81 = vector.broadcast %80 : vector<8x1xi1> to vector<8x256xi1>
    %82 = vector.broadcast %cst_34 : f32 to vector<8x256xf32>
    %83 = arith.select %81, %79, %82 : vector<8x256xi1>, vector<8x256xf32>
    %84 = arith.truncf %78 : vector<8x256xf32> to vector<8x256xbf16>
    %c0_35 = arith.constant 0 : index
    %c0_36 = arith.constant 0 : index
    %c0_37 = arith.constant 0 : index
    %85 = vector.load %arg6[%c0_35, %c0_36, %c0_37] : memref<3x256x256xbf16, #tpu.memory_space<vmem>>, vector<1x256x256xbf16>
    %86 = vector.shape_cast %85 : vector<1x256x256xbf16> to vector<256x256xbf16>
    %cst_38 = arith.constant dense<0.000000e+00> : vector<8x256xf32>
    %87 = tpu.matmul %84, %86, %cst_38 {dimension_numbers = #tpu.dot_dimension_numbers<[1], [0], [0], [1], [0, 0, 1, 1], [], []>} : vector<8x256xbf16>, vector<256x256xbf16>, vector<8x256xf32> -> vector<8x256xf32>
    %88 = arith.truncf %73 : vector<8x256xf32> to vector<8x256xbf16>
    %c1_39 = arith.constant 1 : index
    %c0_40 = arith.constant 0 : index
    %c0_41 = arith.constant 0 : index
    %89 = vector.load %arg6[%c1_39, %c0_40, %c0_41] : memref<3x256x256xbf16, #tpu.memory_space<vmem>>, vector<1x256x256xbf16>
    %90 = vector.shape_cast %89 : vector<1x256x256xbf16> to vector<256x256xbf16>
    %cst_42 = arith.constant dense<0.000000e+00> : vector<8x256xf32>
    %91 = tpu.matmul %88, %90, %cst_42 {dimension_numbers = #tpu.dot_dimension_numbers<[1], [0], [0], [1], [0, 0, 1, 1], [], []>} : vector<8x256xbf16>, vector<256x256xbf16>, vector<8x256xf32> -> vector<8x256xf32>
    %92 = arith.addf %87, %91 : vector<8x256xf32>
    %93 = arith.truncf %83 : vector<8x256xf32> to vector<8x256xbf16>
    %c2_43 = arith.constant 2 : index
    %c0_44 = arith.constant 0 : index
    %c0_45 = arith.constant 0 : index
    %94 = vector.load %arg6[%c2_43, %c0_44, %c0_45] : memref<3x256x256xbf16, #tpu.memory_space<vmem>>, vector<1x256x256xbf16>
    %95 = vector.shape_cast %94 : vector<1x256x256xbf16> to vector<256x256xbf16>
    %cst_46 = arith.constant dense<0.000000e+00> : vector<8x256xf32>
    %96 = tpu.matmul %93, %95, %cst_46 {dimension_numbers = #tpu.dot_dimension_numbers<[1], [0], [0], [1], [0, 0, 1, 1], [], []>} : vector<8x256xbf16>, vector<256x256xbf16>, vector<8x256xf32> -> vector<8x256xf32>
    %97 = arith.addf %92, %96 : vector<8x256xf32>
    %c0_47 = arith.constant 0 : index
    %c0_48 = arith.constant 0 : index
    %98 = vector.load %arg7[%c0_47, %c0_48] : memref<1x256xf32, #tpu.memory_space<vmem>>, vector<1x256xf32>
    %99 = vector.broadcast %98 : vector<1x256xf32> to vector<8x256xf32>
    %100 = arith.addf %97, %99 : vector<8x256xf32>
    %cst_49 = arith.constant dense<0.000000e+00> : vector<8xf32>
    %101 = vector.multi_reduction <add>, %100, %cst_49 [1] : vector<8x256xf32> to vector<8xf32>
    %102 = vector.shape_cast %101 : vector<8xf32> to vector<8x1xf32>
    %cst_50 = arith.constant 2.560000e+02 : f32
    %103 = vector.broadcast %cst_50 : f32 to vector<8x1xf32>
    %104 = arith.divf %102, %103 : vector<8x1xf32>
    %105 = vector.broadcast %104 : vector<8x1xf32> to vector<8x256xf32>
    %106 = arith.subf %100, %105 : vector<8x256xf32>
    %107 = arith.mulf %106, %106 : vector<8x256xf32>
    %cst_51 = arith.constant dense<0.000000e+00> : vector<8xf32>
    %108 = vector.multi_reduction <add>, %107, %cst_51 [1] : vector<8x256xf32> to vector<8xf32>
    %109 = vector.shape_cast %108 : vector<8xf32> to vector<8x1xf32>
    %cst_52 = arith.constant 2.560000e+02 : f32
    %110 = vector.broadcast %cst_52 : f32 to vector<8x1xf32>
    %111 = arith.divf %109, %110 : vector<8x1xf32>
    %cst_53 = arith.constant 9.99999974E-6 : f32
    %112 = vector.broadcast %cst_53 : f32 to vector<8x1xf32>
    %113 = arith.addf %111, %112 : vector<8x1xf32>
    %114 = math.rsqrt %113 : vector<8x1xf32>
    %115 = vector.broadcast %114 : vector<8x1xf32> to vector<8x256xf32>
    %116 = arith.mulf %106, %115 : vector<8x256xf32>
    %c0_54 = arith.constant 0 : index
    %c0_55 = arith.constant 0 : index
    %117 = vector.load %arg8[%c0_54, %c0_55] : memref<1x256xf32, #tpu.memory_space<vmem>>, vector<1x256xf32>
    %118 = vector.broadcast %117 : vector<1x256xf32> to vector<8x256xf32>
    %119 = arith.mulf %116, %118 : vector<8x256xf32>
    %c0_56 = arith.constant 0 : index
    %c0_57 = arith.constant 0 : index
    %120 = vector.load %arg9[%c0_56, %c0_57] : memref<1x256xf32, #tpu.memory_space<vmem>>, vector<1x256xf32>
    %121 = vector.broadcast %120 : vector<1x256xf32> to vector<8x256xf32>
    %122 = arith.addf %119, %121 : vector<8x256xf32>
    %cst_58 = arith.constant 0.000000e+00 : f32
    %123 = vector.broadcast %cst_58 : f32 to vector<8x256xf32>
    %124 = arith.maximumf %122, %123 : vector<8x256xf32>
    %c0_59 = arith.constant 0 : index
    %c0_60 = arith.constant 0 : index
    %125 = vector.load %arg10[%c0_59, %c0_60] : memref<1x256xf32, #tpu.memory_space<vmem>>, vector<1x256xf32>
    %cst_61 = arith.constant dense<0.000000e+00> : vector<1x8xf32>
    %126 = tpu.matmul %125, %124, %cst_61 {dimension_numbers = #tpu.dot_dimension_numbers<[1], [1], [0], [0], [0, 0, 1, 0], [], []>} : vector<1x256xf32>, vector<8x256xf32>, vector<1x8xf32> -> vector<1x8xf32>
    %c0_62 = arith.constant 0 : index
    %c0_63 = arith.constant 0 : index
    %127 = memref.load %arg11[%c0_62, %c0_63] : memref<1x1xf32, #tpu.memory_space<smem>>
    %128 = vector.broadcast %127 : f32 to vector<1x8xf32>
    %129 = arith.addf %126, %128 : vector<1x8xf32>
    %cst_64 = arith.constant 0.000000e+00 : f32
    %130 = vector.broadcast %cst_64 : f32 to vector<1x8xf32>
    %131 = arith.maximumf %129, %130 : vector<1x8xf32>
    %c0_65 = arith.constant 0 : index
    %c0_66 = arith.constant 0 : index
    %c0_67 = arith.constant 0 : index
    %132 = vector.load %arg12[%c0_65, %c0_66, %c0_67] : memref<1x1x8xf32, #tpu.memory_space<vmem>>, vector<1x1x8xf32>
    %133 = vector.shape_cast %132 : vector<1x1x8xf32> to vector<1x8xf32>
    %134 = vector.shape_cast %131 : vector<1x8xf32> to vector<1x1x8xf32>
    tpu.vector_store %arg12[%c0_65, %c0_66, %c0_67], %134 {strides = array<i32>} : memref<1x1x8xf32, #tpu.memory_space<vmem>>, vector<1x1x8xf32>,
    return
  }
  func.func @transform_0(%arg0: i32) -> (i32, i32, i32) {
    %c0_i32 = arith.constant 0 : i32
    %c0_i32_0 = arith.constant 0 : i32
    %c0_i32_1 = arith.constant 0 : i32
    return %arg0, %c0_i32, %c0_i32_0 : i32, i32, i32
  }
  func.func @transform_1(%arg0: i32) -> (i32, i32, i32) {
    %c0_i32 = arith.constant 0 : i32
    %c0_i32_0 = arith.constant 0 : i32
    %c0_i32_1 = arith.constant 0 : i32
    %c0_i32_2 = arith.constant 0 : i32
    return %c0_i32, %c0_i32_0, %c0_i32_1 : i32, i32, i32
  }
  func.func @transform_2(%arg0: i32) -> (i32, i32) {
    %c0_i32 = arith.constant 0 : i32
    %c0_i32_0 = arith.constant 0 : i32
    %c0_i32_1 = arith.constant 0 : i32
    return %c0_i32, %c0_i32_0 : i32, i32
  }
  func.func @transform_3(%arg0: i32) -> (i32, i32) {
    %c0_i32 = arith.constant 0 : i32
    %c0_i32_0 = arith.constant 0 : i32
    %c0_i32_1 = arith.constant 0 : i32
    return %c0_i32, %c0_i32_0 : i32, i32
  }
  func.func @transform_4(%arg0: i32) -> (i32, i32) {
    %c0_i32 = arith.constant 0 : i32
    %c0_i32_0 = arith.constant 0 : i32
    %c0_i32_1 = arith.constant 0 : i32
    return %c0_i32, %c0_i32_0 : i32, i32
  }
  func.func @transform_5(%arg0: i32) -> (i32, i32, i32) {
    %c0_i32 = arith.constant 0 : i32
    %c0_i32_0 = arith.constant 0 : i32
    %c0_i32_1 = arith.constant 0 : i32
    %c0_i32_2 = arith.constant 0 : i32
    return %c0_i32, %c0_i32_0, %c0_i32_1 : i32, i32, i32
  }
  func.func @transform_6(%arg0: i32) -> (i32, i32) {
    %c0_i32 = arith.constant 0 : i32
    %c0_i32_0 = arith.constant 0 : i32
    %c0_i32_1 = arith.constant 0 : i32
    return %c0_i32, %c0_i32_0 : i32, i32
  }
  func.func @transform_7(%arg0: i32) -> (i32, i32) {
    %c0_i32 = arith.constant 0 : i32
    %c0_i32_0 = arith.constant 0 : i32
    %c0_i32_1 = arith.constant 0 : i32
    return %c0_i32, %c0_i32_0 : i32, i32
  }
  func.func @transform_8(%arg0: i32) -> (i32, i32) {
    %c0_i32 = arith.constant 0 : i32
    %c0_i32_0 = arith.constant 0 : i32
    %c0_i32_1 = arith.constant 0 : i32
    return %c0_i32, %c0_i32_0 : i32, i32
  }
  func.func @transform_9(%arg0: i32) -> (i32, i32) {
    %c0_i32 = arith.constant 0 : i32
    %c0_i32_0 = arith.constant 0 : i32
    %c0_i32_1 = arith.constant 0 : i32
    return %c0_i32, %c0_i32_0 : i32, i32
  }
  func.func @transform_10(%arg0: i32) -> (i32, i32) {
    %c0_i32 = arith.constant 0 : i32
    %c0_i32_0 = arith.constant 0 : i32
    %c0_i32_1 = arith.constant 0 : i32
    return %c0_i32, %c0_i32_0 : i32, i32
  }
  func.func @transform_11(%arg0: i32) -> (i32, i32, i32) {
    %c0_i32 = arith.constant 0 : i32
    %c0_i32_0 = arith.constant 0 : i32
    %c0_i32_1 = arith.constant 0 : i32
    return %arg0, %c0_i32, %c0_i32_0 : i32, i32, i32
  }
}

</mosaic_0001>

<llo_original>
// kernel: tpu_custom_call.1
$region0: #{tpu_custom_call.1}
  #allocation0 [shape = 'u32[]', space=smem, size = 0x4, offset = 0x4, fixed_abs, tag = 'smem constant byte address 0x4 - core index']
  #allocation1 [shape = 'u32[144,128]{1,0:T(1,128)}', space=vmem, size = 0x12000, scoped, tag = 'internal scratch']
  #allocation2 [shape = 'f32[1,1]{1,0:T(1,128)S(6)}', space=smem, size = 0x200, scoped, tag = 'scoped memory for tpu_custom_call.1']
  %s0 = inlined_call_operand.hbm [shape: f32[2,8,256], index: 0, kind: input, shape index: {}]
  %s1 = inlined_call_operand.hbm [shape: bf16[3,256,256], index: 1, kind: input, shape index: {}]
  %s2 = inlined_call_operand.vmem [shape: f32[1,256], index: 2, kind: input, shape index: {}]
  %s3 = inlined_call_operand.vmem [shape: f32[1,256], index: 3, kind: input, shape index: {}]
  %s4 = inlined_call_operand.vmem [shape: f32[1,256], index: 4, kind: input, shape index: {}]
  %s5 = inlined_call_operand.hbm [shape: bf16[3,256,256], index: 5, kind: input, shape index: {}]
  %s6 = inlined_call_operand.vmem [shape: f32[1,256], index: 6, kind: input, shape index: {}]
  %s7 = inlined_call_operand.vmem [shape: f32[1,256], index: 7, kind: input, shape index: {}]
  %s8 = inlined_call_operand.vmem [shape: f32[1,256], index: 8, kind: input, shape index: {}]
  %s9 = inlined_call_operand.vmem [shape: f32[1,256], index: 9, kind: input, shape index: {}]
  %s10 = inlined_call_operand.<no memory space> [shape: f32[1,1], index: 10, kind: input, shape index: {}]
  %s11 = inlined_call_operand.hbm [shape: f32[2,1,8], index: 11, kind: output, shape index: {}]
  %s12 = sld [smem:[#allocation0]]
  $region89: #{tpu_custom_call.1} parent=0
    _
  %s14 = ssub.s32 1, %s12
  %s15 = scalar_select 0, %s14, %s12
  %16 = sst [smem:[#allocation2]] %s10
  $region1: #{tpu_custom_call.1} parent=0
    #allocation3 [shape = 'u8[16384]{0}', space=vmem, size = 0x4000, scoped, tag = 'input window, operand 0']
    #allocation4 [shape = 's32[2]{0}', space=sflag, size = 0x8, scoped, tag = 'scoped memory for tpu_custom_call.1']
    #allocation5 [shape = 's32[2]{0}', space=sflag, size = 0x8, scoped, tag = 'scoped memory for tpu_custom_call.1']
    #allocation6 [shape = 'u8[393216]{0}', space=vmem, size = 0x60000, scoped, tag = 'input window, operand 1, single buffered']
    #allocation7 [shape = 's32[1]{0}', space=sflag, size = 0x4, scoped, tag = 'scoped memory for tpu_custom_call.1']
    #allocation8 [shape = 'u8[393216]{0}', space=vmem, size = 0x60000, scoped, tag = 'input window, operand 5, single buffered']
    #allocation9 [shape = 'u8[1024]{0}', space=vmem, size = 0x400, scoped, tag = 'output window, operand 0']
    %17 = vsyncpa [#allocation4], 0
    %s18 = scalar_lea.sflag [#allocation4], 1
    %19 = vsyncpa %s18, 0
    %20 = vsyncpa [#allocation7], 0
    %21 = vsyncpa [#allocation5], 0
    %s22 = scalar_lea.sflag [#allocation5], 1
    %23 = vsyncpa %s22, 0
    loop: start=0, step=1, limit=4
    $region2: #{tpu_custom_call.1} parent=1 // loop_pre_header
      _
    $region3: #{tpu_custom_call.1} parent=1 // loop_header
      %s25 = sphi 0, %s29
      %p26 = scmp.ge.s32.totalorder %s25, 4
      %s35 = sphi 0, %s37
      %s38 = sphi 0, %s35
      %s39 = sphi 0, %s38
      %s55 = sphi 0, %s39
      %s59 = sphi 0, %s59
      %s61 = sphi 0, %s59
      %s62 = sphi 0, %s61
      %s76 = sphi 0, %s62
      %s80 = sphi 0, %s80
      %s82 = sphi 0, %s80
      %s83 = sphi 0, %s82
      %s97 = sphi 0, %s83
      %s101 = sphi 0, %s101
      %s103 = sphi 0, %s101
      %s104 = sphi 0, %s103
      %s118 = sphi 0, %s104
      %s122 = sphi 0, %s122
      %s124 = sphi 0, %s122
      %s125 = sphi 0, %s124
      %s139 = sphi 0, %s125
      %s143 = sphi 0, %s143
      %s145 = sphi 0, %s143
      %s146 = sphi 0, %s145
      %s160 = sphi 0, %s146
      %s164 = sphi 0, %s164
      %s166 = sphi 0, %s164
      %s167 = sphi 0, %s166
      %s181 = sphi 0, %s167
      %s185 = sphi 0, %s185
      %s187 = sphi 0, %s185
      %s188 = sphi 0, %s187
      %s202 = sphi 0, %s188
      %s206 = sphi 0, %s206
      %s208 = sphi 0, %s206
      %s209 = sphi 0, %s208
      %s223 = sphi 0, %s209
      %s227 = sphi 0, %s227
      %s229 = sphi 0, %s227
      %s230 = sphi 0, %s229
      %s244 = sphi 0, %s230
      %s248 = sphi 0, %s248
      %s250 = sphi 0, %s248
      %s251 = sphi 0, %s250
      %s265 = sphi 0, %s251
      %s271 = sphi 0, %s273
      %s274 = sphi 0, %s271
      %s275 = sphi 0, %s274
      %s291 = sphi 0, %s275
    $region4: #{tpu_custom_call.1} parent=1 // loop_header_branch
      %28 = sbr.rel (%p26) target = $region8
    $region5: #{tpu_custom_call.1} parent=1 // loop_body
      %s30 = ssub.s32 %s25, 1
      %s31 = ssub.s32 %s25, 2
      %s32 = sadd.s32 %s25, 1
      %s33 = ssub.s32 %s25, %s32
      %p34 = scmp.eq.s32.totalorder %s33, 0
      %s36 = sadd.s32 %s35, 1
      %s37 = scalar_select %p34, %s35, %s36
      %p40 = pneg %p34
      %p41 = scmp.eq.s32.totalorder %s25, 1
      %p42 = por %p40, %p41
      %p43 = scmp.ne.s32.totalorder %s35, %s38
      %p44 = scmp.eq.s32.totalorder %s25, 0
      %p45 = por %p43, %p44
      %p46 = scmp.ne.s32.totalorder %s35, %s38
      %p47 = scmp.eq.s32.totalorder %s30, 1
      %p48 = por %p46, %p47
      %p49 = scmp.ne.s32.totalorder %s38, %s39
      %p50 = scmp.eq.s32.totalorder %s30, 0
      %p51 = por %p49, %p50
      %p52 = scmp.ne.s32.totalorder %s38, %s39
      %p53 = scmp.eq.s32.totalorder %s31, 1
      %p54 = por %p52, %p53
      %p56 = scmp.ne.s32.totalorder %s39, %s55
      %p57 = scmp.eq.s32.totalorder %s31, 0
      %p58 = por %p56, %p57
      %s60 = sadd.s32 %s59, 1
      %p63 = scmp.eq.s32.totalorder %s25, 1
      %p64 = scmp.ne.s32.totalorder %s59, %s61
      %p65 = scmp.eq.s32.totalorder %s25, 0
      %p66 = por %p64, %p65
      %p67 = scmp.ne.s32.totalorder %s59, %s61
      %p68 = scmp.eq.s32.totalorder %s30, 1
      %p69 = por %p67, %p68
      %p70 = scmp.ne.s32.totalorder %s61, %s62
      %p71 = scmp.eq.s32.totalorder %s30, 0
      %p72 = por %p70, %p71
      %p73 = scmp.ne.s32.totalorder %s61, %s62
      %p74 = scmp.eq.s32.totalorder %s31, 1
      %p75 = por %p73, %p74
      %p77 = scmp.ne.s32.totalorder %s62, %s76
      %p78 = scmp.eq.s32.totalorder %s31, 0
      %p79 = por %p77, %p78
      %s81 = sadd.s32 %s80, 1
      %p84 = scmp.eq.s32.totalorder %s25, 1
      %p85 = scmp.ne.s32.totalorder %s80, %s82
      %p86 = scmp.eq.s32.totalorder %s25, 0
      %p87 = por %p85, %p86
      %p88 = scmp.ne.s32.totalorder %s80, %s82
      %p89 = scmp.eq.s32.totalorder %s30, 1
      %p90 = por %p88, %p89
      %p91 = scmp.ne.s32.totalorder %s82, %s83
      %p92 = scmp.eq.s32.totalorder %s30, 0
      %p93 = por %p91, %p92
      %p94 = scmp.ne.s32.totalorder %s82, %s83
      %p95 = scmp.eq.s32.totalorder %s31, 1
      %p96 = por %p94, %p95
      %p98 = scmp.ne.s32.totalorder %s83, %s97
      %p99 = scmp.eq.s32.totalorder %s31, 0
      %p100 = por %p98, %p99
      %s102 = sadd.s32 %s101, 1
      %p105 = scmp.eq.s32.totalorder %s25, 1
      %p106 = scmp.ne.s32.totalorder %s101, %s103
      %p107 = scmp.eq.s32.totalorder %s25, 0
      %p108 = por %p106, %p107
      %p109 = scmp.ne.s32.totalorder %s101, %s103
      %p110 = scmp.eq.s32.totalorder %s30, 1
      %p111 = por %p109, %p110
      %p112 = scmp.ne.s32.totalorder %s103, %s104
      %p113 = scmp.eq.s32.totalorder %s30, 0
      %p114 = por %p112, %p113
      %p115 = scmp.ne.s32.totalorder %s103, %s104
      %p116 = scmp.eq.s32.totalorder %s31, 1
      %p117 = por %p115, %p116
      %p119 = scmp.ne.s32.totalorder %s104, %s118
      %p120 = scmp.eq.s32.totalorder %s31, 0
      %p121 = por %p119, %p120
      %s123 = sadd.s32 %s122, 1
      %p126 = scmp.eq.s32.totalorder %s25, 1
      %p127 = scmp.ne.s32.totalorder %s122, %s124
      %p128 = scmp.eq.s32.totalorder %s25, 0
      %p129 = por %p127, %p128
      %p130 = scmp.ne.s32.totalorder %s122, %s124
      %p131 = scmp.eq.s32.totalorder %s30, 1
      %p132 = por %p130, %p131
      %p133 = scmp.ne.s32.totalorder %s124, %s125
      %p134 = scmp.eq.s32.totalorder %s30, 0
      %p135 = por %p133, %p134
      %p136 = scmp.ne.s32.totalorder %s124, %s125
      %p137 = scmp.eq.s32.totalorder %s31, 1
      %p138 = por %p136, %p137
      %p140 = scmp.ne.s32.totalorder %s125, %s139
      %p141 = scmp.eq.s32.totalorder %s31, 0
      %p142 = por %p140, %p141
      %s144 = sadd.s32 %s143, 1
      %p147 = scmp.eq.s32.totalorder %s25, 1
      %p148 = scmp.ne.s32.totalorder %s143, %s145
      %p149 = scmp.eq.s32.totalorder %s25, 0
      %p150 = por %p148, %p149
      %p151 = scmp.ne.s32.totalorder %s143, %s145
      %p152 = scmp.eq.s32.totalorder %s30, 1
      %p153 = por %p151, %p152
      %p154 = scmp.ne.s32.totalorder %s145, %s146
      %p155 = scmp.eq.s32.totalorder %s30, 0
      %p156 = por %p154, %p155
      %p157 = scmp.ne.s32.totalorder %s145, %s146
      %p158 = scmp.eq.s32.totalorder %s31, 1
      %p159 = por %p157, %p158
      %p161 = scmp.ne.s32.totalorder %s146, %s160
      %p162 = scmp.eq.s32.totalorder %s31, 0
      %p163 = por %p161, %p162
      %s165 = sadd.s32 %s164, 1
      %p168 = scmp.eq.s32.totalorder %s25, 1
      %p169 = scmp.ne.s32.totalorder %s164, %s166
      %p170 = scmp.eq.s32.totalorder %s25, 0
      %p171 = por %p169, %p170
      %p172 = scmp.ne.s32.totalorder %s164, %s166
      %p173 = scmp.eq.s32.totalorder %s30, 1
      %p174 = por %p172, %p173
      %p175 = scmp.ne.s32.totalorder %s166, %s167
      %p176 = scmp.eq.s32.totalorder %s30, 0
      %p177 = por %p175, %p176
      %p178 = scmp.ne.s32.totalorder %s166, %s167
      %p179 = scmp.eq.s32.totalorder %s31, 1
      %p180 = por %p178, %p179
      %p182 = scmp.ne.s32.totalorder %s167, %s181
      %p183 = scmp.eq.s32.totalorder %s31, 0
      %p184 = por %p182, %p183
      %s186 = sadd.s32 %s185, 1
      %p189 = scmp.eq.s32.totalorder %s25, 1
      %p190 = scmp.ne.s32.totalorder %s185, %s187
      %p191 = scmp.eq.s32.totalorder %s25, 0
      %p192 = por %p190, %p191
      %p193 = scmp.ne.s32.totalorder %s185, %s187
      %p194 = scmp.eq.s32.totalorder %s30, 1
      %p195 = por %p193, %p194
      %p196 = scmp.ne.s32.totalorder %s187, %s188
      %p197 = scmp.eq.s32.totalorder %s30, 0
      %p198 = por %p196, %p197
      %p199 = scmp.ne.s32.totalorder %s187, %s188
      %p200 = scmp.eq.s32.totalorder %s31, 1
      %p201 = por %p199, %p200
      %p203 = scmp.ne.s32.totalorder %s188, %s202
      %p204 = scmp.eq.s32.totalorder %s31, 0
      %p205 = por %p203, %p204
      %s207 = sadd.s32 %s206, 1
      %p210 = scmp.eq.s32.totalorder %s25, 1
      %p211 = scmp.ne.s32.totalorder %s206, %s208
      %p212 = scmp.eq.s32.totalorder %s25, 0
      %p213 = por %p211, %p212
      %p214 = scmp.ne.s32.totalorder %s206, %s208
      %p215 = scmp.eq.s32.totalorder %s30, 1
      %p216 = por %p214, %p215
      %p217 = scmp.ne.s32.totalorder %s208, %s209
      %p218 = scmp.eq.s32.totalorder %s30, 0
      %p219 = por %p217, %p218
      %p220 = scmp.ne.s32.totalorder %s208, %s209
      %p221 = scmp.eq.s32.totalorder %s31, 1
      %p222 = por %p220, %p221
      %p224 = scmp.ne.s32.totalorder %s209, %s223
      %p225 = scmp.eq.s32.totalorder %s31, 0
      %p226 = por %p224, %p225
      %s228 = sadd.s32 %s227, 1
      %p231 = scmp.eq.s32.totalorder %s25, 1
      %p232 = scmp.ne.s32.totalorder %s227, %s229
      %p233 = scmp.eq.s32.totalorder %s25, 0
      %p234 = por %p232, %p233
      %p235 = scmp.ne.s32.totalorder %s227, %s229
      %p236 = scmp.eq.s32.totalorder %s30, 1
      %p237 = por %p235, %p236
      %p238 = scmp.ne.s32.totalorder %s229, %s230
      %p239 = scmp.eq.s32.totalorder %s30, 0
      %p240 = por %p238, %p239
      %p241 = scmp.ne.s32.totalorder %s229, %s230
      %p242 = scmp.eq.s32.totalorder %s31, 1
      %p243 = por %p241, %p242
      %p245 = scmp.ne.s32.totalorder %s230, %s244
      %p246 = scmp.eq.s32.totalorder %s31, 0
      %p247 = por %p245, %p246
      %s249 = sadd.s32 %s248, 1
      %p252 = scmp.eq.s32.totalorder %s25, 1
      %p253 = scmp.ne.s32.totalorder %s248, %s250
      %p254 = scmp.eq.s32.totalorder %s25, 0
      %p255 = por %p253, %p254
      %p256 = scmp.ne.s32.totalorder %s248, %s250
      %p257 = scmp.eq.s32.totalorder %s30, 1
      %p258 = por %p256, %p257
      %p259 = scmp.ne.s32.totalorder %s250, %s251
      %p260 = scmp.eq.s32.totalorder %s30, 0
      %p261 = por %p259, %p260
      %p262 = scmp.ne.s32.totalorder %s250, %s251
      %p263 = scmp.eq.s32.totalorder %s31, 1
      %p264 = por %p262, %p263
      %p266 = scmp.ne.s32.totalorder %s251, %s265
      %p267 = scmp.eq.s32.totalorder %s31, 0
      %p268 = por %p266, %p267
      %s269 = ssub.s32 %s25, %s32
      %p270 = scmp.eq.s32.totalorder %s269, 0
      %s272 = sadd.s32 %s271, 1
      %s273 = scalar_select %p270, %s271, %s272
      %p276 = pneg %p270
      %p277 = scmp.eq.s32.totalorder %s25, 1
      %p278 = por %p276, %p277
      %p279 = scmp.ne.s32.totalorder %s271, %s274
      %p280 = scmp.eq.s32.totalorder %s25, 0
      %p281 = por %p279, %p280
      %p282 = scmp.ne.s32.totalorder %s271, %s274
      %p283 = scmp.eq.s32.totalorder %s30, 1
      %p284 = por %p282, %p283
      %p285 = scmp.ne.s32.totalorder %s274, %s275
      %p286 = scmp.eq.s32.totalorder %s30, 0
      %p287 = por %p285, %p286
      %p288 = scmp.ne.s32.totalorder %s274, %s275
      %p289 = scmp.eq.s32.totalorder %s31, 1
      %p290 = por %p288, %p289
      %p292 = scmp.ne.s32.totalorder %s275, %s291
      %p293 = scmp.eq.s32.totalorder %s31, 0
      %p294 = por %p292, %p293
      %p295 = scmp.le.s32.totalorder 1, %s25
      %p296 = scmp.lt.s32.totalorder %s25, 3
      %p297 = pnand %p295, %p296
      %p298 = pneg %p297
      // Predicated region
      $region9: #{tpu_custom_call.1} parent=5 // pred_check
        _
      $region10: #{tpu_custom_call.1} parent=5 // pred_check_branch
        %300 = sbr.rel (%p297) target = $region12
      $region11: #{tpu_custom_call.1} parent=5 // pred_region
        %s301 = ssub.s32 %s25, 1
        // Predicated region
        $region13: #{tpu_custom_call.1} parent=11 // pred_check
          %p302 = pneg %p72
        $region14: #{tpu_custom_call.1} parent=11 // pred_check_branch
          %304 = sbr.rel (%p302) target = $region16
        $region15: #{tpu_custom_call.1} parent=11 // pred_region
          %s306 = ssub.s32 12288, 12288
          %307 = vsyncadd [#allocation7], %s306
          %s308 = sshll.u32 [#allocation6], 4
          %s309 = int_to_ptr.vmem [resolvable:$true] %s308
          %314 = dma.hbm_to_vmem [thread:$0]  %s1, 12288, %s309, [#allocation7], 128, 128, 8
        $region16: #{tpu_custom_call.1} parent=11 // pred_fallthru
          _
        // Predicated region
        $region17: #{tpu_custom_call.1} parent=11 // pred_check
          %p315 = pneg %p93
        $region18: #{tpu_custom_call.1} parent=11 // pred_check_branch
          %317 = sbr.rel (%p315) target = $region20
        $region19: #{tpu_custom_call.1} parent=11 // pred_region
          _
        $region20: #{tpu_custom_call.1} parent=11 // pred_fallthru
          _
        // Predicated region
        $region21: #{tpu_custom_call.1} parent=11 // pred_check
          %p318 = pneg %p114
        $region22: #{tpu_custom_call.1} parent=11 // pred_check_branch
          %320 = sbr.rel (%p318) target = $region24
        $region23: #{tpu_custom_call.1} parent=11 // pred_region
          _
        $region24: #{tpu_custom_call.1} parent=11 // pred_fallthru
          _
        // Predicated region
        $region25: #{tpu_custom_call.1} parent=11 // pred_check
          %p321 = pneg %p135
        $region26: #{tpu_custom_call.1} parent=11 // pred_check_branch
          %323 = sbr.rel (%p321) target = $region28
        $region27: #{tpu_custom_call.1} parent=11 // pred_region
          _
        $region28: #{tpu_custom_call.1} parent=11 // pred_fallthru
          _
        // Predicated region
        $region29: #{tpu_custom_call.1} parent=11 // pred_check
          %p324 = pneg %p156
        $region30: #{tpu_custom_call.1} parent=11 // pred_check_branch
          %326 = sbr.rel (%p324) target = $region32
        $region31: #{tpu_custom_call.1} parent=11 // pred_region
          %s328 = ssub.s32 12288, 12288
          %329 = vsyncadd [#allocation7], %s328
          %s330 = sshll.u32 [#allocation8], 4
          %s331 = int_to_ptr.vmem [resolvable:$true] %s330
          %336 = dma.hbm_to_vmem [thread:$0]  %s5, 12288, %s331, [#allocation7], 128, 128, 8
        $region32: #{tpu_custom_call.1} parent=11 // pred_fallthru
          _
        // Predicated region
        $region33: #{tpu_custom_call.1} parent=11 // pred_check
          %p337 = pneg %p177
        $region34: #{tpu_custom_call.1} parent=11 // pred_check_branch
          %339 = sbr.rel (%p337) target = $region36
        $region35: #{tpu_custom_call.1} parent=11 // pred_region
          _
        $region36: #{tpu_custom_call.1} parent=11 // pred_fallthru
          _
        // Predicated region
        $region37: #{tpu_custom_call.1} parent=11 // pred_check
          %p340 = pneg %p198
        $region38: #{tpu_custom_call.1} parent=11 // pred_check_branch
          %342 = sbr.rel (%p340) target = $region40
        $region39: #{tpu_custom_call.1} parent=11 // pred_region
          _
        $region40: #{tpu_custom_call.1} parent=11 // pred_fallthru
          _
        // Predicated region
        $region41: #{tpu_custom_call.1} parent=11 // pred_check
          %p343 = pneg %p219
        $region42: #{tpu_custom_call.1} parent=11 // pred_check_branch
          %345 = sbr.rel (%p343) target = $region44
        $region43: #{tpu_custom_call.1} parent=11 // pred_region
          _
        $region44: #{tpu_custom_call.1} parent=11 // pred_fallthru
          _
        // Predicated region
        $region45: #{tpu_custom_call.1} parent=11 // pred_check
          %p346 = pneg %p240
        $region46: #{tpu_custom_call.1} parent=11 // pred_check_branch
          %348 = sbr.rel (%p346) target = $region48
        $region47: #{tpu_custom_call.1} parent=11 // pred_region
          _
        $region48: #{tpu_custom_call.1} parent=11 // pred_fallthru
          _
        // Predicated region
        $region49: #{tpu_custom_call.1} parent=11 // pred_check
          %p349 = pneg %p261
        $region50: #{tpu_custom_call.1} parent=11 // pred_check_branch
          %351 = sbr.rel (%p349) target = $region52
        $region51: #{tpu_custom_call.1} parent=11 // pred_region
          _
        $region52: #{tpu_custom_call.1} parent=11 // pred_fallthru
          _
      $region12: #{tpu_custom_call.1} parent=5 // pred_fallthru
        _
      %p352 = scmp.lt.s32.totalorder %s25, 2
      // Predicated region
      $region53: #{tpu_custom_call.1} parent=5 // pred_check
        %p353 = pneg %p352
      $region54: #{tpu_custom_call.1} parent=5 // pred_check_branch
        %355 = sbr.rel (%p353) target = $region56
      $region55: #{tpu_custom_call.1} parent=5 // pred_region
        // Predicated region
        $region57: #{tpu_custom_call.1} parent=55 // pred_check
          %p356 = pneg %p45
        $region58: #{tpu_custom_call.1} parent=55 // pred_check_branch
          %358 = sbr.rel (%p356) target = $region60
        $region59: #{tpu_custom_call.1} parent=55 // pred_region
          %s359 = sand.u32 %s35, 1
          %s360 = scalar_lea.sflag [#allocation4], %s359
          %s361 = sand.u32 %s35, 1
          %s362 = smul.addr %s361, 16
          %s363 = scalar_lea.vmem [#allocation3], %s362
          %s365 = ssub.s32 256, 256
          %366 = vsyncadd %s360, %s365
          %s367 = smul.addr %s25, 2
          %s368 = smul.addr %s367, 128
          %s369 = scalar_lea.hbm %s0, %s368
          %s371 = sshll.u32 %s363, 4
          %s372 = int_to_ptr.vmem [resolvable:$true] %s371
          %374 = dma.hbm_to_vmem [thread:$0]  %s369, 256, %s372, %s360
        $region60: #{tpu_custom_call.1} parent=55 // pred_fallthru
          _
      $region56: #{tpu_custom_call.1} parent=5 // pred_fallthru
        _
      %p375 = scmp.le.s32.totalorder 1, %s25
      %p376 = scmp.lt.s32.totalorder %s25, 3
      %p377 = pnand %p375, %p376
      %p378 = pneg %p377
      // Predicated region
      $region61: #{tpu_custom_call.1} parent=5 // pred_check
        _
      $region62: #{tpu_custom_call.1} parent=5 // pred_check_branch
        %380 = sbr.rel (%p377) target = $region64
      $region63: #{tpu_custom_call.1} parent=5 // pred_region
        %s381 = ssub.s32 %s25, 1
        %s382 = sand.u32 %s38, 1
        %s383 = scalar_lea.sflag [#allocation4], %s382
        %s384 = sand.u32 %s38, 1
        %s385 = smul.addr %s384, 16
        %s386 = scalar_lea.vmem [#allocation3], %s385
        // Predicated region
        $region65: #{tpu_custom_call.1} parent=63 // pred_check
          %p387 = pneg %p51
        $region66: #{tpu_custom_call.1} parent=63 // pred_check_branch
          %389 = sbr.rel (%p387) target = $region68
        $region67: #{tpu_custom_call.1} parent=63 // pred_region
          %390 = dma.done %s383, 256
        $region68: #{tpu_custom_call.1} parent=63 // pred_fallthru
          _
        // Predicated region
        $region69: #{tpu_custom_call.1} parent=63 // pred_check
          %p391 = pneg %p72
        $region70: #{tpu_custom_call.1} parent=63 // pred_check_branch
          %393 = sbr.rel (%p391) target = $region72
        $region71: #{tpu_custom_call.1} parent=63 // pred_region
          %394 = dma.done [#allocation7], 12288
        $region72: #{tpu_custom_call.1} parent=63 // pred_fallthru
          _
        // Predicated region
        $region73: #{tpu_custom_call.1} parent=63 // pred_check
          %p395 = pneg %p156
        $region74: #{tpu_custom_call.1} parent=63 // pred_check_branch
          %397 = sbr.rel (%p395) target = $region76
        $region75: #{tpu_custom_call.1} parent=63 // pred_region
          %398 = dma.done [#allocation7], 12288
        $region76: #{tpu_custom_call.1} parent=63 // pred_fallthru
          _
        %s399 = sand.u32 %s38, 1
        %s400 = scalar_lea.sflag [#allocation4], %s399
        %s401 = sand.u32 %s38, 1
        %s402 = smul.addr %s401, 16
        %s403 = scalar_lea.vmem [#allocation3], %s402
        %p404 = pneg %p51
        %p405 = pneg %p48
        %p406 = pneg %p72
        %p407 = pneg %p69
        %p408 = pneg %p93
        %p409 = pneg %p90
        %p410 = pneg %p114
        %p411 = pneg %p111
        %p412 = pneg %p135
        %p413 = pneg %p132
        %p414 = pneg %p156
        %p415 = pneg %p153
        %p416 = pneg %p177
        %p417 = pneg %p174
        %p418 = pneg %p198
        %p419 = pneg %p195
        %p420 = pneg %p219
        %p421 = pneg %p216
        %p422 = pneg %p240
        %p423 = pneg %p237
        %p424 = pneg %p261
        %p425 = pneg %p258
        %p426 = pneg %p287
        %p427 = pneg %p284
        %s428 = sand.u32 %s274, 1
        %s429 = scalar_lea.sflag [#allocation5], %s428
        %s430 = sand.u32 %s274, 1
        %s431 = scalar_lea.vmem [#allocation9], %s430
        %v432 = vld [vmem:[%s386] sm:$0xff]
        %v433 = vld [vmem:[%s386 + $0x8] sm:$0xff]
        %v434 = vlaneseq
        %v435 = vshrl.u32 %v434, 7
        %vm436 = vcmp.lt.s32.totalorder %v435, 0
        %v437 = vsub.s32 0, %v435
        %v438 = vsel %vm436, %v437, %v435
        %v439 = vshrl.u32 %v438, 3
        %v440 = vand.u32 %v438, 7
        %v441 = vsub.s32 0, %v440
        %v442 = vsel %vm436, %v441, %v440
        %vm443 = vcmp.ne.s32.totalorder %v442, 0
        %vm444 = vcmp.lt.s32.totalorder %v442, 0
        %vm445 = vmand %vm444, %vm443
        %v446 = vadd.s32 %v442, 8
        %v447 = vsel %vm445, %v446, %v442
        %vm448 = vcmp.ne.s32.totalorder %v447, 0
        %vm449 = vcmp.ne.s32.totalorder %v447, 7
        %v450 = vrot.slane %v432, 7
        %v451 = vrot.slane %v433, 7
        %v452 = vsel %vm448, 1, 0
        %vm453 = vcmp.eq.s32.totalorder %v452, 1
        %v454 = vsel %vm453, %v450, 0.0
        %v455 = vsel %vm453, %v451, 0.0
        %v456 = vrot.slane %v432, 1
        %v457 = vrot.slane %v433, 1
        %v458 = vsel %vm449, 1, 0
        %vm459 = vcmp.eq.s32.totalorder %v458, 1
        %v460 = vsel %vm459, %v456, 0.0
        %v461 = vsel %vm459, %v457, 0.0
        %v462 = vpack.c.bf16 %v454, %v454
        %v463 = vpack.c.bf16 %v455, %v455
        %v464 = vld [vmem:[#allocation6] sm:$0xff]
        %v465 = vld [vmem:[#allocation6 + $0x8] sm:$0xff]
        %v466 = vld [vmem:[#allocation6 + $0x10] sm:$0xff]
        %v467 = vld [vmem:[#allocation6 + $0x18] sm:$0xff]
        %v468 = vld [vmem:[#allocation6 + $0x20] sm:$0xff]
        %v469 = vld [vmem:[#allocation6 + $0x28] sm:$0xff]
        %v470 = vld [vmem:[#allocation6 + $0x30] sm:$0xff]
        %v471 = vld [vmem:[#allocation6 + $0x38] sm:$0xff]
        %v472 = vld [vmem:[#allocation6 + $0x40] sm:$0xff]
        %v473 = vld [vmem:[#allocation6 + $0x48] sm:$0xff]
        %v474 = vld [vmem:[#allocation6 + $0x50] sm:$0xff]
        %v475 = vld [vmem:[#allocation6 + $0x58] sm:$0xff]
        %v476 = vld [vmem:[#allocation6 + $0x60] sm:$0xff]
        %v477 = vld [vmem:[#allocation6 + $0x68] sm:$0xff]
        %v478 = vld [vmem:[#allocation6 + $0x70] sm:$0xff]
        %v479 = vld [vmem:[#allocation6 + $0x78] sm:$0xff]
        %v480 = vld [vmem:[#allocation6 + $0x80] sm:$0xff]
        %v481 = vld [vmem:[#allocation6 + $0x88] sm:$0xff]
        %v482 = vld [vmem:[#allocation6 + $0x90] sm:$0xff]
        %v483 = vld [vmem:[#allocation6 + $0x98] sm:$0xff]
        %v484 = vld [vmem:[#allocation6 + $0xa0] sm:$0xff]
        %v485 = vld [vmem:[#allocation6 + $0xa8] sm:$0xff]
        %v486 = vld [vmem:[#allocation6 + $0xb0] sm:$0xff]
        %v487 = vld [vmem:[#allocation6 + $0xb8] sm:$0xff]
        %v488 = vld [vmem:[#allocation6 + $0xc0] sm:$0xff]
        %v489 = vld [vmem:[#allocation6 + $0xc8] sm:$0xff]
        %v490 = vld [vmem:[#allocation6 + $0xd0] sm:$0xff]
        %v491 = vld [vmem:[#allocation6 + $0xd8] sm:$0xff]
        %v492 = vld [vmem:[#allocation6 + $0xe0] sm:$0xff]
        %v493 = vld [vmem:[#allocation6 + $0xe8] sm:$0xff]
        %v494 = vld [vmem:[#allocation6 + $0xf0] sm:$0xff]
        %v495 = vld [vmem:[#allocation6 + $0xf8] sm:$0xff]
        %v496 = vpack.c.bf16 %v432, %v432
        %v497 = vpack.c.bf16 %v433, %v433
        %s498 = scalar_lea.vmem [#allocation6], 256
        %v499 = vld [vmem:[%s498] sm:$0xff]
        %v500 = vld [vmem:[%s498 + $0x8] sm:$0xff]
        %v501 = vld [vmem:[%s498 + $0x10] sm:$0xff]
        %v502 = vld [vmem:[%s498 + $0x18] sm:$0xff]
        %v503 = vld [vmem:[%s498 + $0x20] sm:$0xff]
        %v504 = vld [vmem:[%s498 + $0x28] sm:$0xff]
        %v505 = vld [vmem:[%s498 + $0x30] sm:$0xff]
        %v506 = vld [vmem:[%s498 + $0x38] sm:$0xff]
        %v507 = vld [vmem:[%s498 + $0x40] sm:$0xff]
        %v508 = vld [vmem:[%s498 + $0x48] sm:$0xff]
        %v509 = vld [vmem:[%s498 + $0x50] sm:$0xff]
        %v510 = vld [vmem:[%s498 + $0x58] sm:$0xff]
        %v511 = vld [vmem:[%s498 + $0x60] sm:$0xff]
        %v512 = vld [vmem:[%s498 + $0x68] sm:$0xff]
        %v513 = vld [vmem:[%s498 + $0x70] sm:$0xff]
        %v514 = vld [vmem:[%s498 + $0x78] sm:$0xff]
        %v515 = vld [vmem:[%s498 + $0x80] sm:$0xff]
        %v516 = vld [vmem:[%s498 + $0x88] sm:$0xff]
        %v517 = vld [vmem:[%s498 + $0x90] sm:$0xff]
        %v518 = vld [vmem:[%s498 + $0x98] sm:$0xff]
        %v519 = vld [vmem:[%s498 + $0xa0] sm:$0xff]
        %v520 = vld [vmem:[%s498 + $0xa8] sm:$0xff]
        %v521 = vld [vmem:[%s498 + $0xb0] sm:$0xff]
        %v522 = vld [vmem:[%s498 + $0xb8] sm:$0xff]
        %v523 = vld [vmem:[%s498 + $0xc0] sm:$0xff]
        %v524 = vld [vmem:[%s498 + $0xc8] sm:$0xff]
        %v525 = vld [vmem:[%s498 + $0xd0] sm:$0xff]
        %v526 = vld [vmem:[%s498 + $0xd8] sm:$0xff]
        %v527 = vld [vmem:[%s498 + $0xe0] sm:$0xff]
        %v528 = vld [vmem:[%s498 + $0xe8] sm:$0xff]
        %v529 = vld [vmem:[%s498 + $0xf0] sm:$0xff]
        %v530 = vld [vmem:[%s498 + $0xf8] sm:$0xff]
        %v563 = vunpack.c.l.b16 %v499
        %v564 = vunpack.c.h.b16 %v499
        %v565 = vunpack.c.l.b16 %v500
        %v566 = vunpack.c.h.b16 %v500
        %v567 = vunpack.c.l.b16 %v501
        %v568 = vunpack.c.h.b16 %v501
        %v569 = vunpack.c.l.b16 %v502
        %v570 = vunpack.c.h.b16 %v502
        %v571 = vunpack.c.l.b16 %v503
        %v572 = vunpack.c.h.b16 %v503
        %v573 = vunpack.c.l.b16 %v504
        %v574 = vunpack.c.h.b16 %v504
        %v575 = vunpack.c.l.b16 %v505
        %v576 = vunpack.c.h.b16 %v505
        %v577 = vunpack.c.l.b16 %v506
        %v578 = vunpack.c.h.b16 %v506
        %v579 = vunpack.c.l.b16 %v507
        %v580 = vunpack.c.h.b16 %v507
        %v581 = vunpack.c.l.b16 %v508
        %v582 = vunpack.c.h.b16 %v508
        %v583 = vunpack.c.l.b16 %v509
        %v584 = vunpack.c.h.b16 %v509
        %v585 = vunpack.c.l.b16 %v510
        %v586 = vunpack.c.h.b16 %v510
        %v587 = vunpack.c.l.b16 %v511
        %v588 = vunpack.c.h.b16 %v511
        %v589 = vunpack.c.l.b16 %v512
        %v590 = vunpack.c.h.b16 %v512
        %v591 = vunpack.c.l.b16 %v513
        %v592 = vunpack.c.h.b16 %v513
        %v593 = vunpack.c.l.b16 %v514
        %v594 = vunpack.c.h.b16 %v514
        %v595 = vunpack.c.l.b16 %v515
        %v596 = vunpack.c.h.b16 %v515
        %v597 = vunpack.c.l.b16 %v516
        %v598 = vunpack.c.h.b16 %v516
        %v599 = vunpack.c.l.b16 %v517
        %v600 = vunpack.c.h.b16 %v517
        %v601 = vunpack.c.l.b16 %v518
        %v602 = vunpack.c.h.b16 %v518
        %v603 = vunpack.c.l.b16 %v519
        %v604 = vunpack.c.h.b16 %v519
        %v605 = vunpack.c.l.b16 %v520
        %v606 = vunpack.c.h.b16 %v520
        %v607 = vunpack.c.l.b16 %v521
        %v608 = vunpack.c.h.b16 %v521
        %v609 = vunpack.c.l.b16 %v522
        %v610 = vunpack.c.h.b16 %v522
        %v611 = vunpack.c.l.b16 %v523
        %v612 = vunpack.c.h.b16 %v523
        %v613 = vunpack.c.l.b16 %v524
        %v614 = vunpack.c.h.b16 %v524
        %v615 = vunpack.c.l.b16 %v525
        %v616 = vunpack.c.h.b16 %v525
        %v617 = vunpack.c.l.b16 %v526
        %v618 = vunpack.c.h.b16 %v526
        %v619 = vunpack.c.l.b16 %v527
        %v620 = vunpack.c.h.b16 %v527
        %v621 = vunpack.c.l.b16 %v528
        %v622 = vunpack.c.h.b16 %v528
        %v623 = vunpack.c.l.b16 %v529
        %v624 = vunpack.c.h.b16 %v529
        %v625 = vunpack.c.l.b16 %v530
        %v626 = vunpack.c.h.b16 %v530
        %v627 = vpack.c.b16 %v565, %v563
        %v628 = vpack.c.b16 %v566, %v564
        %v629 = vpack.c.b16 %v569, %v567
        %v630 = vpack.c.b16 %v570, %v568
        %v631 = vpack.c.b16 %v573, %v571
        %v632 = vpack.c.b16 %v574, %v572
        %v633 = vpack.c.b16 %v577, %v575
        %v634 = vpack.c.b16 %v578, %v576
        %v635 = vpack.c.b16 %v581, %v579
        %v636 = vpack.c.b16 %v582, %v580
        %v637 = vpack.c.b16 %v585, %v583
        %v638 = vpack.c.b16 %v586, %v584
        %v639 = vpack.c.b16 %v589, %v587
        %v640 = vpack.c.b16 %v590, %v588
        %v641 = vpack.c.b16 %v593, %v591
        %v642 = vpack.c.b16 %v594, %v592
        %v643 = vpack.c.b16 %v597, %v595
        %v644 = vpack.c.b16 %v598, %v596
        %v645 = vpack.c.b16 %v601, %v599
        %v646 = vpack.c.b16 %v602, %v600
        %v647 = vpack.c.b16 %v605, %v603
        %v648 = vpack.c.b16 %v606, %v604
        %v649 = vpack.c.b16 %v609, %v607
        %v650 = vpack.c.b16 %v610, %v608
        %v651 = vpack.c.b16 %v613, %v611
        %v652 = vpack.c.b16 %v614, %v612
        %v653 = vpack.c.b16 %v617, %v615
        %v654 = vpack.c.b16 %v618, %v616
        %v655 = vpack.c.b16 %v621, %v619
        %v656 = vpack.c.b16 %v622, %v620
        %v657 = vpack.c.b16 %v625, %v623
        %v658 = vpack.c.b16 %v626, %v624
        %691 = vmatprep.subr.bf16.mxu0 %v642
        %692 = vmatpush1.bf16.msra.mxu0 %v641
        %693 = vmatprep.subr.bf16.mxu0 %v640
        %694 = vmatpush1.bf16.msra.mxu0 %v639
        %695 = vmatprep.subr.bf16.mxu0 %v638
        %696 = vmatpush1.bf16.msra.mxu0 %v637
        %697 = vmatprep.subr.bf16.mxu0 %v636
        %698 = vmatpush1.bf16.msra.mxu0 %v635
        %699 = vmatprep.subr.bf16.mxu0 %v634
        %700 = vmatpush1.bf16.msra.mxu0 %v633
        %701 = vmatprep.subr.bf16.mxu0 %v632
        %702 = vmatpush1.bf16.msra.mxu0 %v631
        %703 = vmatprep.subr.bf16.mxu0 %v630
        %704 = vmatpush1.bf16.msra.mxu0 %v629
        %705 = vmatprep.subr.bf16.mxu0 %v628
        %706 = vmatpush1.bf16.msra.mxu0 %v627
        %707 = vmatprep.subr.bf16.mxu0 %v658
        %708 = vmatpush2.bf16.msra.mxu0 %v657
        %709 = vmatprep.subr.bf16.mxu0 %v656
        %710 = vmatpush2.bf16.msra.mxu0 %v655
        %711 = vmatprep.subr.bf16.mxu0 %v654
        %712 = vmatpush2.bf16.msra.mxu0 %v653
        %713 = vmatprep.subr.bf16.mxu0 %v652
        %714 = vmatpush2.bf16.msra.mxu0 %v651
        %715 = vmatprep.subr.bf16.mxu0 %v650
        %716 = vmatpush2.bf16.msra.mxu0 %v649
        %717 = vmatprep.subr.bf16.mxu0 %v648
        %718 = vmatpush2.bf16.msra.mxu0 %v647
        %719 = vmatprep.subr.bf16.mxu0 %v646
        %720 = vmatpush2.bf16.msra.mxu0 %v645
        %721 = vmatprep.subr.bf16.mxu0 %v644
        %722 = vmatpush2.bf16.msra.mxu0 %v643
        %723 = vmatprep.mubr.bf16.mxu0 %v497
        %724 = vmatmul.mubr.bf16.gmra.mxu0 %v496
        %v725 = vpop.f32.mrf.mxu0
        %v726 = vadd.f32 0.0, %v725
        %v727 = vpop.f32.mrf.mxu0
        %v728 = vadd.f32 0.0, %v727
        %v729 = vpop.f32.mrf.mxu0
        %v730 = vpop.f32.mrf.mxu0
        %731 = vdwg.mxu0
        %v764 = vunpack.c.l.b16 %v464
        %v765 = vunpack.c.h.b16 %v464
        %v766 = vunpack.c.l.b16 %v465
        %v767 = vunpack.c.h.b16 %v465
        %v768 = vunpack.c.l.b16 %v466
        %v769 = vunpack.c.h.b16 %v466
        %v770 = vunpack.c.l.b16 %v467
        %v771 = vunpack.c.h.b16 %v467
        %v772 = vunpack.c.l.b16 %v468
        %v773 = vunpack.c.h.b16 %v468
        %v774 = vunpack.c.l.b16 %v469
        %v775 = vunpack.c.h.b16 %v469
        %v776 = vunpack.c.l.b16 %v470
        %v777 = vunpack.c.h.b16 %v470
        %v778 = vunpack.c.l.b16 %v471
        %v779 = vunpack.c.h.b16 %v471
        %v780 = vunpack.c.l.b16 %v472
        %v781 = vunpack.c.h.b16 %v472
        %v782 = vunpack.c.l.b16 %v473
        %v783 = vunpack.c.h.b16 %v473
        %v784 = vunpack.c.l.b16 %v474
        %v785 = vunpack.c.h.b16 %v474
        %v786 = vunpack.c.l.b16 %v475
        %v787 = vunpack.c.h.b16 %v475
        %v788 = vunpack.c.l.b16 %v476
        %v789 = vunpack.c.h.b16 %v476
        %v790 = vunpack.c.l.b16 %v477
        %v791 = vunpack.c.h.b16 %v477
        %v792 = vunpack.c.l.b16 %v478
        %v793 = vunpack.c.h.b16 %v478
        %v794 = vunpack.c.l.b16 %v479
        %v795 = vunpack.c.h.b16 %v479
        %v796 = vunpack.c.l.b16 %v480
        %v797 = vunpack.c.h.b16 %v480
        %v798 = vunpack.c.l.b16 %v481
        %v799 = vunpack.c.h.b16 %v481
        %v800 = vunpack.c.l.b16 %v482
        %v801 = vunpack.c.h.b16 %v482
        %v802 = vunpack.c.l.b16 %v483
        %v803 = vunpack.c.h.b16 %v483
        %v804 = vunpack.c.l.b16 %v484
        %v805 = vunpack.c.h.b16 %v484
        %v806 = vunpack.c.l.b16 %v485
        %v807 = vunpack.c.h.b16 %v485
        %v808 = vunpack.c.l.b16 %v486
        %v809 = vunpack.c.h.b16 %v486
        %v810 = vunpack.c.l.b16 %v487
        %v811 = vunpack.c.h.b16 %v487
        %v812 = vunpack.c.l.b16 %v488
        %v813 = vunpack.c.h.b16 %v488
        %v814 = vunpack.c.l.b16 %v489
        %v815 = vunpack.c.h.b16 %v489
        %v816 = vunpack.c.l.b16 %v490
        %v817 = vunpack.c.h.b16 %v490
        %v818 = vunpack.c.l.b16 %v491
        %v819 = vunpack.c.h.b16 %v491
        %v820 = vunpack.c.l.b16 %v492
        %v821 = vunpack.c.h.b16 %v492
        %v822 = vunpack.c.l.b16 %v493
        %v823 = vunpack.c.h.b16 %v493
        %v824 = vunpack.c.l.b16 %v494
        %v825 = vunpack.c.h.b16 %v494
        %v826 = vunpack.c.l.b16 %v495
        %v827 = vunpack.c.h.b16 %v495
        %v828 = vpack.c.b16 %v766, %v764
        %v829 = vpack.c.b16 %v767, %v765
        %v830 = vpack.c.b16 %v770, %v768
        %v831 = vpack.c.b16 %v771, %v769
        %v832 = vpack.c.b16 %v774, %v772
        %v833 = vpack.c.b16 %v775, %v773
        %v834 = vpack.c.b16 %v778, %v776
        %v835 = vpack.c.b16 %v779, %v777
        %v836 = vpack.c.b16 %v782, %v780
        %v837 = vpack.c.b16 %v783, %v781
        %v838 = vpack.c.b16 %v786, %v784
        %v839 = vpack.c.b16 %v787, %v785
        %v840 = vpack.c.b16 %v790, %v788
        %v841 = vpack.c.b16 %v791, %v789
        %v842 = vpack.c.b16 %v794, %v792
        %v843 = vpack.c.b16 %v795, %v793
        %v844 = vpack.c.b16 %v798, %v796
        %v845 = vpack.c.b16 %v799, %v797
        %v846 = vpack.c.b16 %v802, %v800
        %v847 = vpack.c.b16 %v803, %v801
        %v848 = vpack.c.b16 %v806, %v804
        %v849 = vpack.c.b16 %v807, %v805
        %v850 = vpack.c.b16 %v810, %v808
        %v851 = vpack.c.b16 %v811, %v809
        %v852 = vpack.c.b16 %v814, %v812
        %v853 = vpack.c.b16 %v815, %v813
        %v854 = vpack.c.b16 %v818, %v816
        %v855 = vpack.c.b16 %v819, %v817
        %v856 = vpack.c.b16 %v822, %v820
        %v857 = vpack.c.b16 %v823, %v821
        %v858 = vpack.c.b16 %v826, %v824
        %v859 = vpack.c.b16 %v827, %v825
        %892 = vmatprep.subr.bf16.mxu0 %v843
        %893 = vmatpush1.bf16.msra.mxu0 %v842
        %894 = vmatprep.subr.bf16.mxu0 %v841
        %895 = vmatpush1.bf16.msra.mxu0 %v840
        %896 = vmatprep.subr.bf16.mxu0 %v839
        %897 = vmatpush1.bf16.msra.mxu0 %v838
        %898 = vmatprep.subr.bf16.mxu0 %v837
        %899 = vmatpush1.bf16.msra.mxu0 %v836
        %900 = vmatprep.subr.bf16.mxu0 %v835
        %901 = vmatpush1.bf16.msra.mxu0 %v834
        %902 = vmatprep.subr.bf16.mxu0 %v833
        %903 = vmatpush1.bf16.msra.mxu0 %v832
        %904 = vmatprep.subr.bf16.mxu0 %v831
        %905 = vmatpush1.bf16.msra.mxu0 %v830
        %906 = vmatprep.subr.bf16.mxu0 %v829
        %907 = vmatpush1.bf16.msra.mxu0 %v828
        %908 = vmatprep.subr.bf16.mxu0 %v859
        %909 = vmatpush2.bf16.msra.mxu0 %v858
        %910 = vmatprep.subr.bf16.mxu0 %v857
        %911 = vmatpush2.bf16.msra.mxu0 %v856
        %912 = vmatprep.subr.bf16.mxu0 %v855
        %913 = vmatpush2.bf16.msra.mxu0 %v854
        %914 = vmatprep.subr.bf16.mxu0 %v853
        %915 = vmatpush2.bf16.msra.mxu0 %v852
        %916 = vmatprep.subr.bf16.mxu0 %v851
        %917 = vmatpush2.bf16.msra.mxu0 %v850
        %918 = vmatprep.subr.bf16.mxu0 %v849
        %919 = vmatpush2.bf16.msra.mxu0 %v848
        %920 = vmatprep.subr.bf16.mxu0 %v847
        %921 = vmatpush2.bf16.msra.mxu0 %v846
        %922 = vmatprep.subr.bf16.mxu0 %v845
        %923 = vmatpush2.bf16.msra.mxu0 %v844
        %924 = vmatprep.mubr.bf16.mxu0 %v463
        %925 = vmatmul.mubr.bf16.gmra.mxu0 %v462
        %v926 = vpop.f32.mrf.mxu0
        %v927 = vadd.f32 %v726, %v926
        %v928 = vpop.f32.mrf.mxu0
        %v929 = vadd.f32 %v728, %v928
        %v930 = vpop.f32.mrf.mxu0
        %v931 = vpop.f32.mrf.mxu0
        %932 = vdwg.mxu0
        %v933 = vpack.c.bf16 %v460, %v460
        %v934 = vpack.c.bf16 %v461, %v461
        %s935 = scalar_lea.vmem [#allocation6], 512
        %v936 = vld [vmem:[%s935] sm:$0xff]
        %v937 = vld [vmem:[%s935 + $0x8] sm:$0xff]
        %v938 = vld [vmem:[%s935 + $0x10] sm:$0xff]
        %v939 = vld [vmem:[%s935 + $0x18] sm:$0xff]
        %v940 = vld [vmem:[%s935 + $0x20] sm:$0xff]
        %v941 = vld [vmem:[%s935 + $0x28] sm:$0xff]
        %v942 = vld [vmem:[%s935 + $0x30] sm:$0xff]
        %v943 = vld [vmem:[%s935 + $0x38] sm:$0xff]
        %v944 = vld [vmem:[%s935 + $0x40] sm:$0xff]
        %v945 = vld [vmem:[%s935 + $0x48] sm:$0xff]
        %v946 = vld [vmem:[%s935 + $0x50] sm:$0xff]
        %v947 = vld [vmem:[%s935 + $0x58] sm:$0xff]
        %v948 = vld [vmem:[%s935 + $0x60] sm:$0xff]
        %v949 = vld [vmem:[%s935 + $0x68] sm:$0xff]
        %v950 = vld [vmem:[%s935 + $0x70] sm:$0xff]
        %v951 = vld [vmem:[%s935 + $0x78] sm:$0xff]
        %v952 = vld [vmem:[%s935 + $0x80] sm:$0xff]
        %v953 = vld [vmem:[%s935 + $0x88] sm:$0xff]
        %v954 = vld [vmem:[%s935 + $0x90] sm:$0xff]
        %v955 = vld [vmem:[%s935 + $0x98] sm:$0xff]
        %v956 = vld [vmem:[%s935 + $0xa0] sm:$0xff]
        %v957 = vld [vmem:[%s935 + $0xa8] sm:$0xff]
        %v958 = vld [vmem:[%s935 + $0xb0] sm:$0xff]
        %v959 = vld [vmem:[%s935 + $0xb8] sm:$0xff]
        %v960 = vld [vmem:[%s935 + $0xc0] sm:$0xff]
        %v961 = vld [vmem:[%s935 + $0xc8] sm:$0xff]
        %v962 = vld [vmem:[%s935 + $0xd0] sm:$0xff]
        %v963 = vld [vmem:[%s935 + $0xd8] sm:$0xff]
        %v964 = vld [vmem:[%s935 + $0xe0] sm:$0xff]
        %v965 = vld [vmem:[%s935 + $0xe8] sm:$0xff]
        %v966 = vld [vmem:[%s935 + $0xf0] sm:$0xff]
        %v967 = vld [vmem:[%s935 + $0xf8] sm:$0xff]
        %v1000 = vunpack.c.l.b16 %v936
        %v1001 = vunpack.c.h.b16 %v936
        %v1002 = vunpack.c.l.b16 %v937
        %v1003 = vunpack.c.h.b16 %v937
        %v1004 = vunpack.c.l.b16 %v938
        %v1005 = vunpack.c.h.b16 %v938
        %v1006 = vunpack.c.l.b16 %v939
        %v1007 = vunpack.c.h.b16 %v939
        %v1008 = vunpack.c.l.b16 %v940
        %v1009 = vunpack.c.h.b16 %v940
        %v1010 = vunpack.c.l.b16 %v941
        %v1011 = vunpack.c.h.b16 %v941
        %v1012 = vunpack.c.l.b16 %v942
        %v1013 = vunpack.c.h.b16 %v942
        %v1014 = vunpack.c.l.b16 %v943
        %v1015 = vunpack.c.h.b16 %v943
        %v1016 = vunpack.c.l.b16 %v944
        %v1017 = vunpack.c.h.b16 %v944
        %v1018 = vunpack.c.l.b16 %v945
        %v1019 = vunpack.c.h.b16 %v945
        %v1020 = vunpack.c.l.b16 %v946
        %v1021 = vunpack.c.h.b16 %v946
        %v1022 = vunpack.c.l.b16 %v947
        %v1023 = vunpack.c.h.b16 %v947
        %v1024 = vunpack.c.l.b16 %v948
        %v1025 = vunpack.c.h.b16 %v948
        %v1026 = vunpack.c.l.b16 %v949
        %v1027 = vunpack.c.h.b16 %v949
        %v1028 = vunpack.c.l.b16 %v950
        %v1029 = vunpack.c.h.b16 %v950
        %v1030 = vunpack.c.l.b16 %v951
        %v1031 = vunpack.c.h.b16 %v951
        %v1032 = vunpack.c.l.b16 %v952
        %v1033 = vunpack.c.h.b16 %v952
        %v1034 = vunpack.c.l.b16 %v953
        %v1035 = vunpack.c.h.b16 %v953
        %v1036 = vunpack.c.l.b16 %v954
        %v1037 = vunpack.c.h.b16 %v954
        %v1038 = vunpack.c.l.b16 %v955
        %v1039 = vunpack.c.h.b16 %v955
        %v1040 = vunpack.c.l.b16 %v956
        %v1041 = vunpack.c.h.b16 %v956
        %v1042 = vunpack.c.l.b16 %v957
        %v1043 = vunpack.c.h.b16 %v957
        %v1044 = vunpack.c.l.b16 %v958
        %v1045 = vunpack.c.h.b16 %v958
        %v1046 = vunpack.c.l.b16 %v959
        %v1047 = vunpack.c.h.b16 %v959
        %v1048 = vunpack.c.l.b16 %v960
        %v1049 = vunpack.c.h.b16 %v960
        %v1050 = vunpack.c.l.b16 %v961
        %v1051 = vunpack.c.h.b16 %v961
        %v1052 = vunpack.c.l.b16 %v962
        %v1053 = vunpack.c.h.b16 %v962
        %v1054 = vunpack.c.l.b16 %v963
        %v1055 = vunpack.c.h.b16 %v963
        %v1056 = vunpack.c.l.b16 %v964
        %v1057 = vunpack.c.h.b16 %v964
        %v1058 = vunpack.c.l.b16 %v965
        %v1059 = vunpack.c.h.b16 %v965
        %v1060 = vunpack.c.l.b16 %v966
        %v1061 = vunpack.c.h.b16 %v966
        %v1062 = vunpack.c.l.b16 %v967
        %v1063 = vunpack.c.h.b16 %v967
        %v1064 = vpack.c.b16 %v1002, %v1000
        %v1065 = vpack.c.b16 %v1003, %v1001
        %v1066 = vpack.c.b16 %v1006, %v1004
        %v1067 = vpack.c.b16 %v1007, %v1005
        %v1068 = vpack.c.b16 %v1010, %v1008
        %v1069 = vpack.c.b16 %v1011, %v1009
        %v1070 = vpack.c.b16 %v1014, %v1012
        %v1071 = vpack.c.b16 %v1015, %v1013
        %v1072 = vpack.c.b16 %v1018, %v1016
        %v1073 = vpack.c.b16 %v1019, %v1017
        %v1074 = vpack.c.b16 %v1022, %v1020
        %v1075 = vpack.c.b16 %v1023, %v1021
        %v1076 = vpack.c.b16 %v1026, %v1024
        %v1077 = vpack.c.b16 %v1027, %v1025
        %v1078 = vpack.c.b16 %v1030, %v1028
        %v1079 = vpack.c.b16 %v1031, %v1029
        %v1080 = vpack.c.b16 %v1034, %v1032
        %v1081 = vpack.c.b16 %v1035, %v1033
        %v1082 = vpack.c.b16 %v1038, %v1036
        %v1083 = vpack.c.b16 %v1039, %v1037
        %v1084 = vpack.c.b16 %v1042, %v1040
        %v1085 = vpack.c.b16 %v1043, %v1041
        %v1086 = vpack.c.b16 %v1046, %v1044
        %v1087 = vpack.c.b16 %v1047, %v1045
        %v1088 = vpack.c.b16 %v1050, %v1048
        %v1089 = vpack.c.b16 %v1051, %v1049
        %v1090 = vpack.c.b16 %v1054, %v1052
        %v1091 = vpack.c.b16 %v1055, %v1053
        %v1092 = vpack.c.b16 %v1058, %v1056
        %v1093 = vpack.c.b16 %v1059, %v1057
        %v1094 = vpack.c.b16 %v1062, %v1060
        %v1095 = vpack.c.b16 %v1063, %v1061
        %1128 = vmatprep.subr.bf16.mxu0 %v1079
        %1129 = vmatpush1.bf16.msra.mxu0 %v1078
        %1130 = vmatprep.subr.bf16.mxu0 %v1077
        %1131 = vmatpush1.bf16.msra.mxu0 %v1076
        %1132 = vmatprep.subr.bf16.mxu0 %v1075
        %1133 = vmatpush1.bf16.msra.mxu0 %v1074
        %1134 = vmatprep.subr.bf16.mxu0 %v1073
        %1135 = vmatpush1.bf16.msra.mxu0 %v1072
        %1136 = vmatprep.subr.bf16.mxu0 %v1071
        %1137 = vmatpush1.bf16.msra.mxu0 %v1070
        %1138 = vmatprep.subr.bf16.mxu0 %v1069
        %1139 = vmatpush1.bf16.msra.mxu0 %v1068
        %1140 = vmatprep.subr.bf16.mxu0 %v1067
        %1141 = vmatpush1.bf16.msra.mxu0 %v1066
        %1142 = vmatprep.subr.bf16.mxu0 %v1065
        %1143 = vmatpush1.bf16.msra.mxu0 %v1064
        %1144 = vmatprep.subr.bf16.mxu0 %v1095
        %1145 = vmatpush2.bf16.msra.mxu0 %v1094
        %1146 = vmatprep.subr.bf16.mxu0 %v1093
        %1147 = vmatpush2.bf16.msra.mxu0 %v1092
        %1148 = vmatprep.subr.bf16.mxu0 %v1091
        %1149 = vmatpush2.bf16.msra.mxu0 %v1090
        %1150 = vmatprep.subr.bf16.mxu0 %v1089
        %1151 = vmatpush2.bf16.msra.mxu0 %v1088
        %1152 = vmatprep.subr.bf16.mxu0 %v1087
        %1153 = vmatpush2.bf16.msra.mxu0 %v1086
        %1154 = vmatprep.subr.bf16.mxu0 %v1085
        %1155 = vmatpush2.bf16.msra.mxu0 %v1084
        %1156 = vmatprep.subr.bf16.mxu0 %v1083
        %1157 = vmatpush2.bf16.msra.mxu0 %v1082
        %1158 = vmatprep.subr.bf16.mxu0 %v1081
        %1159 = vmatpush2.bf16.msra.mxu0 %v1080
        %1160 = vmatprep.mubr.bf16.mxu0 %v934
        %1161 = vmatmul.mubr.bf16.gmra.mxu0 %v933
        %v1162 = vpop.f32.mrf.mxu0
        %v1163 = vadd.f32 0.0, %v1162
        %v1164 = vpop.f32.mrf.mxu0
        %v1165 = vadd.f32 0.0, %v1164
        %v1166 = vpop.f32.mrf.mxu0
        %v1167 = vpop.f32.mrf.mxu0
        %1168 = vdwg.mxu0
        %v1169 = vadd.f32 %v927, %v1163
        %v1170 = vadd.f32 %v929, %v1165
        %v1171 = vld [vmem:[%s2] sm:$0x3]
        %v1173 = vlaneseq
        %v1174 = vshrl.u32 %v1173, 7
        %v1175 = vsub.s32 0, %v1174
        %v1176 = vrot.slane %v1171, %v1175
        %v1177 = vlaneseq
        %v1178 = vshrl.u32 %v1177, 7
        %v1179 = vsub.s32 1, %v1178
        %v1180 = vrot.slane %v1171, %v1179
        %v1183 = vadd.f32 %v1169, %v1176
        %v1184 = vadd.f32 %v1170, %v1180
        %v1185 = vadd.f32 %v1183, %v1184
        %1186 = vadd.xlane.f32.xlu0 %v1185
        %v1187 = vpop.xlane.xlu0 %1186
        %v1188 = vrcp.pop 256.0
        %v1189 = vmul.f32 %v1187, %v1188
        %v1190 = vsub.f32 %v1183, %v1189
        %v1191 = vsub.f32 %v1184, %v1189
        %v1192 = vmul.f32 %v1190, %v1190
        %v1193 = vmul.f32 %v1191, %v1191
        %v1194 = vadd.f32 %v1192, %v1193
        %1195 = vadd.xlane.f32.xlu0 %v1194
        %v1196 = vpop.xlane.xlu0 %1195
        %v1197 = vmul.f32 %v1196, %v1188
        %v1198 = vadd.f32 %v1197, 1e-05
        %v1199 = vrsqrt.pop %v1198
        %v1200 = vmul.f32 %v1190, %v1199
        %v1201 = vmul.f32 %v1191, %v1199
        %v1202 = vld [vmem:[%s3] sm:$0x3]
        %v1204 = vlaneseq
        %v1205 = vshrl.u32 %v1204, 7
        %v1206 = vsub.s32 0, %v1205
        %v1207 = vrot.slane %v1202, %v1206
        %v1208 = vlaneseq
        %v1209 = vshrl.u32 %v1208, 7
        %v1210 = vsub.s32 1, %v1209
        %v1211 = vrot.slane %v1202, %v1210
        %v1214 = vmul.f32 %v1200, %v1207
        %v1215 = vmul.f32 %v1201, %v1211
        %v1216 = vld [vmem:[%s4] sm:$0x3]
        %v1218 = vlaneseq
        %v1219 = vshrl.u32 %v1218, 7
        %v1220 = vsub.s32 0, %v1219
        %v1221 = vrot.slane %v1216, %v1220
        %v1222 = vlaneseq
        %v1223 = vshrl.u32 %v1222, 7
        %v1224 = vsub.s32 1, %v1223
        %v1225 = vrot.slane %v1216, %v1224
        %v1228 = vadd.f32 %v1214, %v1221
        %v1229 = vadd.f32 %v1215, %v1225
        %v1230 = vmax.f32 %v1228, 0.0
        %v1231 = vmax.f32 %v1229, 0.0
        %v1232 = vrot.slane %v1230, 7
        %v1233 = vrot.slane %v1231, 7
        %v1234 = vsel %vm453, %v1232, 0.0
        %v1235 = vsel %vm453, %v1233, 0.0
        %v1236 = vrot.slane %v1230, 1
        %v1237 = vrot.slane %v1231, 1
        %v1238 = vsel %vm459, %v1236, 0.0
        %v1239 = vsel %vm459, %v1237, 0.0
        %v1240 = vpack.c.bf16 %v1234, %v1234
        %v1241 = vpack.c.bf16 %v1235, %v1235
        %v1242 = vld [vmem:[#allocation8] sm:$0xff]
        %v1243 = vld [vmem:[#allocation8 + $0x8] sm:$0xff]
        %v1244 = vld [vmem:[#allocation8 + $0x10] sm:$0xff]
        %v1245 = vld [vmem:[#allocation8 + $0x18] sm:$0xff]
        %v1246 = vld [vmem:[#allocation8 + $0x20] sm:$0xff]
        %v1247 = vld [vmem:[#allocation8 + $0x28] sm:$0xff]
        %v1248 = vld [vmem:[#allocation8 + $0x30] sm:$0xff]
        %v1249 = vld [vmem:[#allocation8 + $0x38] sm:$0xff]
        %v1250 = vld [vmem:[#allocation8 + $0x40] sm:$0xff]
        %v1251 = vld [vmem:[#allocation8 + $0x48] sm:$0xff]
        %v1252 = vld [vmem:[#allocation8 + $0x50] sm:$0xff]
        %v1253 = vld [vmem:[#allocation8 + $0x58] sm:$0xff]
        %v1254 = vld [vmem:[#allocation8 + $0x60] sm:$0xff]
        %v1255 = vld [vmem:[#allocation8 + $0x68] sm:$0xff]
        %v1256 = vld [vmem:[#allocation8 + $0x70] sm:$0xff]
        %v1257 = vld [vmem:[#allocation8 + $0x78] sm:$0xff]
        %v1258 = vld [vmem:[#allocation8 + $0x80] sm:$0xff]
        %v1259 = vld [vmem:[#allocation8 + $0x88] sm:$0xff]
        %v1260 = vld [vmem:[#allocation8 + $0x90] sm:$0xff]
        %v1261 = vld [vmem:[#allocation8 + $0x98] sm:$0xff]
        %v1262 = vld [vmem:[#allocation8 + $0xa0] sm:$0xff]
        %v1263 = vld [vmem:[#allocation8 + $0xa8] sm:$0xff]
        %v1264 = vld [vmem:[#allocation8 + $0xb0] sm:$0xff]
        %v1265 = vld [vmem:[#allocation8 + $0xb8] sm:$0xff]
        %v1266 = vld [vmem:[#allocation8 + $0xc0] sm:$0xff]
        %v1267 = vld [vmem:[#allocation8 + $0xc8] sm:$0xff]
        %v1268 = vld [vmem:[#allocation8 + $0xd0] sm:$0xff]
        %v1269 = vld [vmem:[#allocation8 + $0xd8] sm:$0xff]
        %v1270 = vld [vmem:[#allocation8 + $0xe0] sm:$0xff]
        %v1271 = vld [vmem:[#allocation8 + $0xe8] sm:$0xff]
        %v1272 = vld [vmem:[#allocation8 + $0xf0] sm:$0xff]
        %v1273 = vld [vmem:[#allocation8 + $0xf8] sm:$0xff]
        %v1274 = vpack.c.bf16 %v1230, %v1230
        %v1275 = vpack.c.bf16 %v1231, %v1231
        %s1276 = scalar_lea.vmem [#allocation8], 256
        %v1277 = vld [vmem:[%s1276] sm:$0xff]
        %v1278 = vld [vmem:[%s1276 + $0x8] sm:$0xff]
        %v1279 = vld [vmem:[%s1276 + $0x10] sm:$0xff]
        %v1280 = vld [vmem:[%s1276 + $0x18] sm:$0xff]
        %v1281 = vld [vmem:[%s1276 + $0x20] sm:$0xff]
        %v1282 = vld [vmem:[%s1276 + $0x28] sm:$0xff]
        %v1283 = vld [vmem:[%s1276 + $0x30] sm:$0xff]
        %v1284 = vld [vmem:[%s1276 + $0x38] sm:$0xff]
        %v1285 = vld [vmem:[%s1276 + $0x40] sm:$0xff]
        %v1286 = vld [vmem:[%s1276 + $0x48] sm:$0xff]
        %v1287 = vld [vmem:[%s1276 + $0x50] sm:$0xff]
        %v1288 = vld [vmem:[%s1276 + $0x58] sm:$0xff]
        %v1289 = vld [vmem:[%s1276 + $0x60] sm:$0xff]
        %v1290 = vld [vmem:[%s1276 + $0x68] sm:$0xff]
        %v1291 = vld [vmem:[%s1276 + $0x70] sm:$0xff]
        %v1292 = vld [vmem:[%s1276 + $0x78] sm:$0xff]
        %v1293 = vld [vmem:[%s1276 + $0x80] sm:$0xff]
        %v1294 = vld [vmem:[%s1276 + $0x88] sm:$0xff]
        %v1295 = vld [vmem:[%s1276 + $0x90] sm:$0xff]
        %v1296 = vld [vmem:[%s1276 + $0x98] sm:$0xff]
        %v1297 = vld [vmem:[%s1276 + $0xa0] sm:$0xff]
        %v1298 = vld [vmem:[%s1276 + $0xa8] sm:$0xff]
        %v1299 = vld [vmem:[%s1276 + $0xb0] sm:$0xff]
        %v1300 = vld [vmem:[%s1276 + $0xb8] sm:$0xff]
        %v1301 = vld [vmem:[%s1276 + $0xc0] sm:$0xff]
        %v1302 = vld [vmem:[%s1276 + $0xc8] sm:$0xff]
        %v1303 = vld [vmem:[%s1276 + $0xd0] sm:$0xff]
        %v1304 = vld [vmem:[%s1276 + $0xd8] sm:$0xff]
        %v1305 = vld [vmem:[%s1276 + $0xe0] sm:$0xff]
        %v1306 = vld [vmem:[%s1276 + $0xe8] sm:$0xff]
        %v1307 = vld [vmem:[%s1276 + $0xf0] sm:$0xff]
        %v1308 = vld [vmem:[%s1276 + $0xf8] sm:$0xff]
        %v1341 = vunpack.c.l.b16 %v1277
        %v1342 = vunpack.c.h.b16 %v1277
        %v1343 = vunpack.c.l.b16 %v1278
        %v1344 = vunpack.c.h.b16 %v1278
        %v1345 = vunpack.c.l.b16 %v1279
        %v1346 = vunpack.c.h.b16 %v1279
        %v1347 = vunpack.c.l.b16 %v1280
        %v1348 = vunpack.c.h.b16 %v1280
        %v1349 = vunpack.c.l.b16 %v1281
        %v1350 = vunpack.c.h.b16 %v1281
        %v1351 = vunpack.c.l.b16 %v1282
        %v1352 = vunpack.c.h.b16 %v1282
        %v1353 = vunpack.c.l.b16 %v1283
        %v1354 = vunpack.c.h.b16 %v1283
        %v1355 = vunpack.c.l.b16 %v1284
        %v1356 = vunpack.c.h.b16 %v1284
        %v1357 = vunpack.c.l.b16 %v1285
        %v1358 = vunpack.c.h.b16 %v1285
        %v1359 = vunpack.c.l.b16 %v1286
        %v1360 = vunpack.c.h.b16 %v1286
        %v1361 = vunpack.c.l.b16 %v1287
        %v1362 = vunpack.c.h.b16 %v1287
        %v1363 = vunpack.c.l.b16 %v1288
        %v1364 = vunpack.c.h.b16 %v1288
        %v1365 = vunpack.c.l.b16 %v1289
        %v1366 = vunpack.c.h.b16 %v1289
        %v1367 = vunpack.c.l.b16 %v1290
        %v1368 = vunpack.c.h.b16 %v1290
        %v1369 = vunpack.c.l.b16 %v1291
        %v1370 = vunpack.c.h.b16 %v1291
        %v1371 = vunpack.c.l.b16 %v1292
        %v1372 = vunpack.c.h.b16 %v1292
        %v1373 = vunpack.c.l.b16 %v1293
        %v1374 = vunpack.c.h.b16 %v1293
        %v1375 = vunpack.c.l.b16 %v1294
        %v1376 = vunpack.c.h.b16 %v1294
        %v1377 = vunpack.c.l.b16 %v1295
        %v1378 = vunpack.c.h.b16 %v1295
        %v1379 = vunpack.c.l.b16 %v1296
        %v1380 = vunpack.c.h.b16 %v1296
        %v1381 = vunpack.c.l.b16 %v1297
        %v1382 = vunpack.c.h.b16 %v1297
        %v1383 = vunpack.c.l.b16 %v1298
        %v1384 = vunpack.c.h.b16 %v1298
        %v1385 = vunpack.c.l.b16 %v1299
        %v1386 = vunpack.c.h.b16 %v1299
        %v1387 = vunpack.c.l.b16 %v1300
        %v1388 = vunpack.c.h.b16 %v1300
        %v1389 = vunpack.c.l.b16 %v1301
        %v1390 = vunpack.c.h.b16 %v1301
        %v1391 = vunpack.c.l.b16 %v1302
        %v1392 = vunpack.c.h.b16 %v1302
        %v1393 = vunpack.c.l.b16 %v1303
        %v1394 = vunpack.c.h.b16 %v1303
        %v1395 = vunpack.c.l.b16 %v1304
        %v1396 = vunpack.c.h.b16 %v1304
        %v1397 = vunpack.c.l.b16 %v1305
        %v1398 = vunpack.c.h.b16 %v1305
        %v1399 = vunpack.c.l.b16 %v1306
        %v1400 = vunpack.c.h.b16 %v1306
        %v1401 = vunpack.c.l.b16 %v1307
        %v1402 = vunpack.c.h.b16 %v1307
        %v1403 = vunpack.c.l.b16 %v1308
        %v1404 = vunpack.c.h.b16 %v1308
        %v1405 = vpack.c.b16 %v1343, %v1341
        %v1406 = vpack.c.b16 %v1344, %v1342
        %v1407 = vpack.c.b16 %v1347, %v1345
        %v1408 = vpack.c.b16 %v1348, %v1346
        %v1409 = vpack.c.b16 %v1351, %v1349
        %v1410 = vpack.c.b16 %v1352, %v1350
        %v1411 = vpack.c.b16 %v1355, %v1353
        %v1412 = vpack.c.b16 %v1356, %v1354
        %v1413 = vpack.c.b16 %v1359, %v1357
        %v1414 = vpack.c.b16 %v1360, %v1358
        %v1415 = vpack.c.b16 %v1363, %v1361
        %v1416 = vpack.c.b16 %v1364, %v1362
        %v1417 = vpack.c.b16 %v1367, %v1365
        %v1418 = vpack.c.b16 %v1368, %v1366
        %v1419 = vpack.c.b16 %v1371, %v1369
        %v1420 = vpack.c.b16 %v1372, %v1370
        %v1421 = vpack.c.b16 %v1375, %v1373
        %v1422 = vpack.c.b16 %v1376, %v1374
        %v1423 = vpack.c.b16 %v1379, %v1377
        %v1424 = vpack.c.b16 %v1380, %v1378
        %v1425 = vpack.c.b16 %v1383, %v1381
        %v1426 = vpack.c.b16 %v1384, %v1382
        %v1427 = vpack.c.b16 %v1387, %v1385
        %v1428 = vpack.c.b16 %v1388, %v1386
        %v1429 = vpack.c.b16 %v1391, %v1389
        %v1430 = vpack.c.b16 %v1392, %v1390
        %v1431 = vpack.c.b16 %v1395, %v1393
        %v1432 = vpack.c.b16 %v1396, %v1394
        %v1433 = vpack.c.b16 %v1399, %v1397
        %v1434 = vpack.c.b16 %v1400, %v1398
        %v1435 = vpack.c.b16 %v1403, %v1401
        %v1436 = vpack.c.b16 %v1404, %v1402
        %1469 = vmatprep.subr.bf16.mxu0 %v1420
        %1470 = vmatpush1.bf16.msra.mxu0 %v1419
        %1471 = vmatprep.subr.bf16.mxu0 %v1418
        %1472 = vmatpush1.bf16.msra.mxu0 %v1417
        %1473 = vmatprep.subr.bf16.mxu0 %v1416
        %1474 = vmatpush1.bf16.msra.mxu0 %v1415
        %1475 = vmatprep.subr.bf16.mxu0 %v1414
        %1476 = vmatpush1.bf16.msra.mxu0 %v1413
        %1477 = vmatprep.subr.bf16.mxu0 %v1412
        %1478 = vmatpush1.bf16.msra.mxu0 %v1411
        %1479 = vmatprep.subr.bf16.mxu0 %v1410
        %1480 = vmatpush1.bf16.msra.mxu0 %v1409
        %1481 = vmatprep.subr.bf16.mxu0 %v1408
        %1482 = vmatpush1.bf16.msra.mxu0 %v1407
        %1483 = vmatprep.subr.bf16.mxu0 %v1406
        %1484 = vmatpush1.bf16.msra.mxu0 %v1405
        %1485 = vmatprep.subr.bf16.mxu0 %v1436
        %1486 = vmatpush2.bf16.msra.mxu0 %v1435
        %1487 = vmatprep.subr.bf16.mxu0 %v1434
        %1488 = vmatpush2.bf16.msra.mxu0 %v1433
        %1489 = vmatprep.subr.bf16.mxu0 %v1432
        %1490 = vmatpush2.bf16.msra.mxu0 %v1431
        %1491 = vmatprep.subr.bf16.mxu0 %v1430
        %1492 = vmatpush2.bf16.msra.mxu0 %v1429
        %1493 = vmatprep.subr.bf16.mxu0 %v1428
        %1494 = vmatpush2.bf16.msra.mxu0 %v1427
        %1495 = vmatprep.subr.bf16.mxu0 %v1426
        %1496 = vmatpush2.bf16.msra.mxu0 %v1425
        %1497 = vmatprep.subr.bf16.mxu0 %v1424
        %1498 = vmatpush2.bf16.msra.mxu0 %v1423
        %1499 = vmatprep.subr.bf16.mxu0 %v1422
        %1500 = vmatpush2.bf16.msra.mxu0 %v1421
        %1501 = vmatprep.mubr.bf16.mxu0 %v1275
        %1502 = vmatmul.mubr.bf16.gmra.mxu0 %v1274
        %v1503 = vpop.f32.mrf.mxu0
        %v1504 = vadd.f32 0.0, %v1503
        %v1505 = vpop.f32.mrf.mxu0
        %v1506 = vadd.f32 0.0, %v1505
        %v1507 = vpop.f32.mrf.mxu0
        %v1508 = vpop.f32.mrf.mxu0
        %1509 = vdwg.mxu0
        %v1542 = vunpack.c.l.b16 %v1242
        %v1543 = vunpack.c.h.b16 %v1242
        %v1544 = vunpack.c.l.b16 %v1243
        %v1545 = vunpack.c.h.b16 %v1243
        %v1546 = vunpack.c.l.b16 %v1244
        %v1547 = vunpack.c.h.b16 %v1244
        %v1548 = vunpack.c.l.b16 %v1245
        %v1549 = vunpack.c.h.b16 %v1245
        %v1550 = vunpack.c.l.b16 %v1246
        %v1551 = vunpack.c.h.b16 %v1246
        %v1552 = vunpack.c.l.b16 %v1247
        %v1553 = vunpack.c.h.b16 %v1247
        %v1554 = vunpack.c.l.b16 %v1248
        %v1555 = vunpack.c.h.b16 %v1248
        %v1556 = vunpack.c.l.b16 %v1249
        %v1557 = vunpack.c.h.b16 %v1249
        %v1558 = vunpack.c.l.b16 %v1250
        %v1559 = vunpack.c.h.b16 %v1250
        %v1560 = vunpack.c.l.b16 %v1251
        %v1561 = vunpack.c.h.b16 %v1251
        %v1562 = vunpack.c.l.b16 %v1252
        %v1563 = vunpack.c.h.b16 %v1252
        %v1564 = vunpack.c.l.b16 %v1253
        %v1565 = vunpack.c.h.b16 %v1253
        %v1566 = vunpack.c.l.b16 %v1254
        %v1567 = vunpack.c.h.b16 %v1254
        %v1568 = vunpack.c.l.b16 %v1255
        %v1569 = vunpack.c.h.b16 %v1255
        %v1570 = vunpack.c.l.b16 %v1256
        %v1571 = vunpack.c.h.b16 %v1256
        %v1572 = vunpack.c.l.b16 %v1257
        %v1573 = vunpack.c.h.b16 %v1257
        %v1574 = vunpack.c.l.b16 %v1258
        %v1575 = vunpack.c.h.b16 %v1258
        %v1576 = vunpack.c.l.b16 %v1259
        %v1577 = vunpack.c.h.b16 %v1259
        %v1578 = vunpack.c.l.b16 %v1260
        %v1579 = vunpack.c.h.b16 %v1260
        %v1580 = vunpack.c.l.b16 %v1261
        %v1581 = vunpack.c.h.b16 %v1261
        %v1582 = vunpack.c.l.b16 %v1262
        %v1583 = vunpack.c.h.b16 %v1262
        %v1584 = vunpack.c.l.b16 %v1263
        %v1585 = vunpack.c.h.b16 %v1263
        %v1586 = vunpack.c.l.b16 %v1264
        %v1587 = vunpack.c.h.b16 %v1264
        %v1588 = vunpack.c.l.b16 %v1265
        %v1589 = vunpack.c.h.b16 %v1265
        %v1590 = vunpack.c.l.b16 %v1266
        %v1591 = vunpack.c.h.b16 %v1266
        %v1592 = vunpack.c.l.b16 %v1267
        %v1593 = vunpack.c.h.b16 %v1267
        %v1594 = vunpack.c.l.b16 %v1268
        %v1595 = vunpack.c.h.b16 %v1268
        %v1596 = vunpack.c.l.b16 %v1269
        %v1597 = vunpack.c.h.b16 %v1269
        %v1598 = vunpack.c.l.b16 %v1270
        %v1599 = vunpack.c.h.b16 %v1270
        %v1600 = vunpack.c.l.b16 %v1271
        %v1601 = vunpack.c.h.b16 %v1271
        %v1602 = vunpack.c.l.b16 %v1272
        %v1603 = vunpack.c.h.b16 %v1272
        %v1604 = vunpack.c.l.b16 %v1273
        %v1605 = vunpack.c.h.b16 %v1273
        %v1606 = vpack.c.b16 %v1544, %v1542
        %v1607 = vpack.c.b16 %v1545, %v1543
        %v1608 = vpack.c.b16 %v1548, %v1546
        %v1609 = vpack.c.b16 %v1549, %v1547
        %v1610 = vpack.c.b16 %v1552, %v1550
        %v1611 = vpack.c.b16 %v1553, %v1551
        %v1612 = vpack.c.b16 %v1556, %v1554
        %v1613 = vpack.c.b16 %v1557, %v1555
        %v1614 = vpack.c.b16 %v1560, %v1558
        %v1615 = vpack.c.b16 %v1561, %v1559
        %v1616 = vpack.c.b16 %v1564, %v1562
        %v1617 = vpack.c.b16 %v1565, %v1563
        %v1618 = vpack.c.b16 %v1568, %v1566
        %v1619 = vpack.c.b16 %v1569, %v1567
        %v1620 = vpack.c.b16 %v1572, %v1570
        %v1621 = vpack.c.b16 %v1573, %v1571
        %v1622 = vpack.c.b16 %v1576, %v1574
        %v1623 = vpack.c.b16 %v1577, %v1575
        %v1624 = vpack.c.b16 %v1580, %v1578
        %v1625 = vpack.c.b16 %v1581, %v1579
        %v1626 = vpack.c.b16 %v1584, %v1582
        %v1627 = vpack.c.b16 %v1585, %v1583
        %v1628 = vpack.c.b16 %v1588, %v1586
        %v1629 = vpack.c.b16 %v1589, %v1587
        %v1630 = vpack.c.b16 %v1592, %v1590
        %v1631 = vpack.c.b16 %v1593, %v1591
        %v1632 = vpack.c.b16 %v1596, %v1594
        %v1633 = vpack.c.b16 %v1597, %v1595
        %v1634 = vpack.c.b16 %v1600, %v1598
        %v1635 = vpack.c.b16 %v1601, %v1599
        %v1636 = vpack.c.b16 %v1604, %v1602
        %v1637 = vpack.c.b16 %v1605, %v1603
        %1670 = vmatprep.subr.bf16.mxu0 %v1621
        %1671 = vmatpush1.bf16.msra.mxu0 %v1620
        %1672 = vmatprep.subr.bf16.mxu0 %v1619
        %1673 = vmatpush1.bf16.msra.mxu0 %v1618
        %1674 = vmatprep.subr.bf16.mxu0 %v1617
        %1675 = vmatpush1.bf16.msra.mxu0 %v1616
        %1676 = vmatprep.subr.bf16.mxu0 %v1615
        %1677 = vmatpush1.bf16.msra.mxu0 %v1614
        %1678 = vmatprep.subr.bf16.mxu0 %v1613
        %1679 = vmatpush1.bf16.msra.mxu0 %v1612
        %1680 = vmatprep.subr.bf16.mxu0 %v1611
        %1681 = vmatpush1.bf16.msra.mxu0 %v1610
        %1682 = vmatprep.subr.bf16.mxu0 %v1609
        %1683 = vmatpush1.bf16.msra.mxu0 %v1608
        %1684 = vmatprep.subr.bf16.mxu0 %v1607
        %1685 = vmatpush1.bf16.msra.mxu0 %v1606
        %1686 = vmatprep.subr.bf16.mxu0 %v1637
        %1687 = vmatpush2.bf16.msra.mxu0 %v1636
        %1688 = vmatprep.subr.bf16.mxu0 %v1635
        %1689 = vmatpush2.bf16.msra.mxu0 %v1634
        %1690 = vmatprep.subr.bf16.mxu0 %v1633
        %1691 = vmatpush2.bf16.msra.mxu0 %v1632
        %1692 = vmatprep.subr.bf16.mxu0 %v1631
        %1693 = vmatpush2.bf16.msra.mxu0 %v1630
        %1694 = vmatprep.subr.bf16.mxu0 %v1629
        %1695 = vmatpush2.bf16.msra.mxu0 %v1628
        %1696 = vmatprep.subr.bf16.mxu0 %v1627
        %1697 = vmatpush2.bf16.msra.mxu0 %v1626
        %1698 = vmatprep.subr.bf16.mxu0 %v1625
        %1699 = vmatpush2.bf16.msra.mxu0 %v1624
        %1700 = vmatprep.subr.bf16.mxu0 %v1623
        %1701 = vmatpush2.bf16.msra.mxu0 %v1622
        %1702 = vmatprep.mubr.bf16.mxu0 %v1241
        %1703 = vmatmul.mubr.bf16.gmra.mxu0 %v1240
        %v1704 = vpop.f32.mrf.mxu0
        %v1705 = vadd.f32 %v1504, %v1704
        %v1706 = vpop.f32.mrf.mxu0
        %v1707 = vadd.f32 %v1506, %v1706
        %v1708 = vpop.f32.mrf.mxu0
        %v1709 = vpop.f32.mrf.mxu0
        %1710 = vdwg.mxu0
        %v1711 = vpack.c.bf16 %v1238, %v1238
        %v1712 = vpack.c.bf16 %v1239, %v1239
        %s1713 = scalar_lea.vmem [#allocation8], 512
        %v1714 = vld [vmem:[%s1713] sm:$0xff]
        %v1715 = vld [vmem:[%s1713 + $0x8] sm:$0xff]
        %v1716 = vld [vmem:[%s1713 + $0x10] sm:$0xff]
        %v1717 = vld [vmem:[%s1713 + $0x18] sm:$0xff]
        %v1718 = vld [vmem:[%s1713 + $0x20] sm:$0xff]
        %v1719 = vld [vmem:[%s1713 + $0x28] sm:$0xff]
        %v1720 = vld [vmem:[%s1713 + $0x30] sm:$0xff]
        %v1721 = vld [vmem:[%s1713 + $0x38] sm:$0xff]
        %v1722 = vld [vmem:[%s1713 + $0x40] sm:$0xff]
        %v1723 = vld [vmem:[%s1713 + $0x48] sm:$0xff]
        %v1724 = vld [vmem:[%s1713 + $0x50] sm:$0xff]
        %v1725 = vld [vmem:[%s1713 + $0x58] sm:$0xff]
        %v1726 = vld [vmem:[%s1713 + $0x60] sm:$0xff]
        %v1727 = vld [vmem:[%s1713 + $0x68] sm:$0xff]
        %v1728 = vld [vmem:[%s1713 + $0x70] sm:$0xff]
        %v1729 = vld [vmem:[%s1713 + $0x78] sm:$0xff]
        %v1730 = vld [vmem:[%s1713 + $0x80] sm:$0xff]
        %v1731 = vld [vmem:[%s1713 + $0x88] sm:$0xff]
        %v1732 = vld [vmem:[%s1713 + $0x90] sm:$0xff]
        %v1733 = vld [vmem:[%s1713 + $0x98] sm:$0xff]
        %v1734 = vld [vmem:[%s1713 + $0xa0] sm:$0xff]
        %v1735 = vld [vmem:[%s1713 + $0xa8] sm:$0xff]
        %v1736 = vld [vmem:[%s1713 + $0xb0] sm:$0xff]
        %v1737 = vld [vmem:[%s1713 + $0xb8] sm:$0xff]
        %v1738 = vld [vmem:[%s1713 + $0xc0] sm:$0xff]
        %v1739 = vld [vmem:[%s1713 + $0xc8] sm:$0xff]
        %v1740 = vld [vmem:[%s1713 + $0xd0] sm:$0xff]
        %v1741 = vld [vmem:[%s1713 + $0xd8] sm:$0xff]
        %v1742 = vld [vmem:[%s1713 + $0xe0] sm:$0xff]
        %v1743 = vld [vmem:[%s1713 + $0xe8] sm:$0xff]
        %v1744 = vld [vmem:[%s1713 + $0xf0] sm:$0xff]
        %v1745 = vld [vmem:[%s1713 + $0xf8] sm:$0xff]
        %v1778 = vunpack.c.l.b16 %v1714
        %v1779 = vunpack.c.h.b16 %v1714
        %v1780 = vunpack.c.l.b16 %v1715
        %v1781 = vunpack.c.h.b16 %v1715
        %v1782 = vunpack.c.l.b16 %v1716
        %v1783 = vunpack.c.h.b16 %v1716
        %v1784 = vunpack.c.l.b16 %v1717
        %v1785 = vunpack.c.h.b16 %v1717
        %v1786 = vunpack.c.l.b16 %v1718
        %v1787 = vunpack.c.h.b16 %v1718
        %v1788 = vunpack.c.l.b16 %v1719
        %v1789 = vunpack.c.h.b16 %v1719
        %v1790 = vunpack.c.l.b16 %v1720
        %v1791 = vunpack.c.h.b16 %v1720
        %v1792 = vunpack.c.l.b16 %v1721
        %v1793 = vunpack.c.h.b16 %v1721
        %v1794 = vunpack.c.l.b16 %v1722
        %v1795 = vunpack.c.h.b16 %v1722
        %v1796 = vunpack.c.l.b16 %v1723
        %v1797 = vunpack.c.h.b16 %v1723
        %v1798 = vunpack.c.l.b16 %v1724
        %v1799 = vunpack.c.h.b16 %v1724
        %v1800 = vunpack.c.l.b16 %v1725
        %v1801 = vunpack.c.h.b16 %v1725
        %v1802 = vunpack.c.l.b16 %v1726
        %v1803 = vunpack.c.h.b16 %v1726
        %v1804 = vunpack.c.l.b16 %v1727
        %v1805 = vunpack.c.h.b16 %v1727
        %v1806 = vunpack.c.l.b16 %v1728
        %v1807 = vunpack.c.h.b16 %v1728
        %v1808 = vunpack.c.l.b16 %v1729
        %v1809 = vunpack.c.h.b16 %v1729
        %v1810 = vunpack.c.l.b16 %v1730
        %v1811 = vunpack.c.h.b16 %v1730
        %v1812 = vunpack.c.l.b16 %v1731
        %v1813 = vunpack.c.h.b16 %v1731
        %v1814 = vunpack.c.l.b16 %v1732
        %v1815 = vunpack.c.h.b16 %v1732
        %v1816 = vunpack.c.l.b16 %v1733
        %v1817 = vunpack.c.h.b16 %v1733
        %v1818 = vunpack.c.l.b16 %v1734
        %v1819 = vunpack.c.h.b16 %v1734
        %v1820 = vunpack.c.l.b16 %v1735
        %v1821 = vunpack.c.h.b16 %v1735
        %v1822 = vunpack.c.l.b16 %v1736
        %v1823 = vunpack.c.h.b16 %v1736
        %v1824 = vunpack.c.l.b16 %v1737
        %v1825 = vunpack.c.h.b16 %v1737
        %v1826 = vunpack.c.l.b16 %v1738
        %v1827 = vunpack.c.h.b16 %v1738
        %v1828 = vunpack.c.l.b16 %v1739
        %v1829 = vunpack.c.h.b16 %v1739
        %v1830 = vunpack.c.l.b16 %v1740
        %v1831 = vunpack.c.h.b16 %v1740
        %v1832 = vunpack.c.l.b16 %v1741
        %v1833 = vunpack.c.h.b16 %v1741
        %v1834 = vunpack.c.l.b16 %v1742
        %v1835 = vunpack.c.h.b16 %v1742
        %v1836 = vunpack.c.l.b16 %v1743
        %v1837 = vunpack.c.h.b16 %v1743
        %v1838 = vunpack.c.l.b16 %v1744
        %v1839 = vunpack.c.h.b16 %v1744
        %v1840 = vunpack.c.l.b16 %v1745
        %v1841 = vunpack.c.h.b16 %v1745
        %v1842 = vpack.c.b16 %v1780, %v1778
        %v1843 = vpack.c.b16 %v1781, %v1779
        %v1844 = vpack.c.b16 %v1784, %v1782
        %v1845 = vpack.c.b16 %v1785, %v1783
        %v1846 = vpack.c.b16 %v1788, %v1786
        %v1847 = vpack.c.b16 %v1789, %v1787
        %v1848 = vpack.c.b16 %v1792, %v1790
        %v1849 = vpack.c.b16 %v1793, %v1791
        %v1850 = vpack.c.b16 %v1796, %v1794
        %v1851 = vpack.c.b16 %v1797, %v1795
        %v1852 = vpack.c.b16 %v1800, %v1798
        %v1853 = vpack.c.b16 %v1801, %v1799
        %v1854 = vpack.c.b16 %v1804, %v1802
        %v1855 = vpack.c.b16 %v1805, %v1803
        %v1856 = vpack.c.b16 %v1808, %v1806
        %v1857 = vpack.c.b16 %v1809, %v1807
        %v1858 = vpack.c.b16 %v1812, %v1810
        %v1859 = vpack.c.b16 %v1813, %v1811
        %v1860 = vpack.c.b16 %v1816, %v1814
        %v1861 = vpack.c.b16 %v1817, %v1815
        %v1862 = vpack.c.b16 %v1820, %v1818
        %v1863 = vpack.c.b16 %v1821, %v1819
        %v1864 = vpack.c.b16 %v1824, %v1822
        %v1865 = vpack.c.b16 %v1825, %v1823
        %v1866 = vpack.c.b16 %v1828, %v1826
        %v1867 = vpack.c.b16 %v1829, %v1827
        %v1868 = vpack.c.b16 %v1832, %v1830
        %v1869 = vpack.c.b16 %v1833, %v1831
        %v1870 = vpack.c.b16 %v1836, %v1834
        %v1871 = vpack.c.b16 %v1837, %v1835
        %v1872 = vpack.c.b16 %v1840, %v1838
        %v1873 = vpack.c.b16 %v1841, %v1839
        %1906 = vmatprep.subr.bf16.mxu0 %v1857
        %1907 = vmatpush1.bf16.msra.mxu0 %v1856
        %1908 = vmatprep.subr.bf16.mxu0 %v1855
        %1909 = vmatpush1.bf16.msra.mxu0 %v1854
        %1910 = vmatprep.subr.bf16.mxu0 %v1853
        %1911 = vmatpush1.bf16.msra.mxu0 %v1852
        %1912 = vmatprep.subr.bf16.mxu0 %v1851
        %1913 = vmatpush1.bf16.msra.mxu0 %v1850
        %1914 = vmatprep.subr.bf16.mxu0 %v1849
        %1915 = vmatpush1.bf16.msra.mxu0 %v1848
        %1916 = vmatprep.subr.bf16.mxu0 %v1847
        %1917 = vmatpush1.bf16.msra.mxu0 %v1846
        %1918 = vmatprep.subr.bf16.mxu0 %v1845
        %1919 = vmatpush1.bf16.msra.mxu0 %v1844
        %1920 = vmatprep.subr.bf16.mxu0 %v1843
        %1921 = vmatpush1.bf16.msra.mxu0 %v1842
        %1922 = vmatprep.subr.bf16.mxu0 %v1873
        %1923 = vmatpush2.bf16.msra.mxu0 %v1872
        %1924 = vmatprep.subr.bf16.mxu0 %v1871
        %1925 = vmatpush2.bf16.msra.mxu0 %v1870
        %1926 = vmatprep.subr.bf16.mxu0 %v1869
        %1927 = vmatpush2.bf16.msra.mxu0 %v1868
        %1928 = vmatprep.subr.bf16.mxu0 %v1867
        %1929 = vmatpush2.bf16.msra.mxu0 %v1866
        %1930 = vmatprep.subr.bf16.mxu0 %v1865
        %1931 = vmatpush2.bf16.msra.mxu0 %v1864
        %1932 = vmatprep.subr.bf16.mxu0 %v1863
        %1933 = vmatpush2.bf16.msra.mxu0 %v1862
        %1934 = vmatprep.subr.bf16.mxu0 %v1861
        %1935 = vmatpush2.bf16.msra.mxu0 %v1860
        %1936 = vmatprep.subr.bf16.mxu0 %v1859
        %1937 = vmatpush2.bf16.msra.mxu0 %v1858
        %1938 = vmatprep.mubr.bf16.mxu0 %v1712
        %1939 = vmatmul.mubr.bf16.gmra.mxu0 %v1711
        %v1940 = vpop.f32.mrf.mxu0
        %v1941 = vadd.f32 0.0, %v1940
        %v1942 = vpop.f32.mrf.mxu0
        %v1943 = vadd.f32 0.0, %v1942
        %v1944 = vpop.f32.mrf.mxu0
        %v1945 = vpop.f32.mrf.mxu0
        %1946 = vdwg.mxu0
        %v1947 = vadd.f32 %v1705, %v1941
        %v1948 = vadd.f32 %v1707, %v1943
        %v1949 = vld [vmem:[%s6] sm:$0x3]
        %v1951 = vlaneseq
        %v1952 = vshrl.u32 %v1951, 7
        %v1953 = vsub.s32 0, %v1952
        %v1954 = vrot.slane %v1949, %v1953
        %v1955 = vlaneseq
        %v1956 = vshrl.u32 %v1955, 7
        %v1957 = vsub.s32 1, %v1956
        %v1958 = vrot.slane %v1949, %v1957
        %v1961 = vadd.f32 %v1947, %v1954
        %v1962 = vadd.f32 %v1948, %v1958
        %v1963 = vadd.f32 %v1961, %v1962
        %1964 = vadd.xlane.f32.xlu0 %v1963
        %v1965 = vpop.xlane.xlu0 %1964
        %v1966 = vmul.f32 %v1965, %v1188
        %v1967 = vsub.f32 %v1961, %v1966
        %v1968 = vsub.f32 %v1962, %v1966
        %v1969 = vmul.f32 %v1967, %v1967
        %v1970 = vmul.f32 %v1968, %v1968
        %v1971 = vadd.f32 %v1969, %v1970
        %1972 = vadd.xlane.f32.xlu0 %v1971
        %v1973 = vpop.xlane.xlu0 %1972
        %v1974 = vmul.f32 %v1973, %v1188
        %v1975 = vadd.f32 %v1974, 1e-05
        %v1976 = vrsqrt.pop %v1975
        %v1977 = vmul.f32 %v1967, %v1976
        %v1978 = vmul.f32 %v1968, %v1976
        %v1979 = vld [vmem:[%s7] sm:$0x3]
        %v1981 = vlaneseq
        %v1982 = vshrl.u32 %v1981, 7
        %v1983 = vsub.s32 0, %v1982
        %v1984 = vrot.slane %v1979, %v1983
        %v1985 = vlaneseq
        %v1986 = vshrl.u32 %v1985, 7
        %v1987 = vsub.s32 1, %v1986
        %v1988 = vrot.slane %v1979, %v1987
        %v1991 = vmul.f32 %v1977, %v1984
        %v1992 = vmul.f32 %v1978, %v1988
        %v1993 = vld [vmem:[%s8] sm:$0x3]
        %v1995 = vlaneseq
        %v1996 = vshrl.u32 %v1995, 7
        %v1997 = vsub.s32 0, %v1996
        %v1998 = vrot.slane %v1993, %v1997
        %v1999 = vlaneseq
        %v2000 = vshrl.u32 %v1999, 7
        %v2001 = vsub.s32 1, %v2000
        %v2002 = vrot.slane %v1993, %v2001
        %v2005 = vadd.f32 %v1991, %v1998
        %v2006 = vadd.f32 %v1992, %v2002
        %v2007 = vmax.f32 %v2005, 0.0
        %v2008 = vmax.f32 %v2006, 0.0
        %v2009 = vld [vmem:[%s9] sm:$0x3]
        %s2010 = sld [smem:[#allocation2]]
        %v2011 = vstv %s2010
        %v2013 = vlaneseq
        %v2014 = vshrl.u32 %v2013, 7
        %v2015 = vsub.s32 0, %v2014
        %v2016 = vrot.slane %v2009, %v2015
        %v2017 = vlaneseq
        %v2018 = vshrl.u32 %v2017, 7
        %v2019 = vsub.s32 1, %v2018
        %v2020 = vrot.slane %v2009, %v2019
        %2023 = vmatprep.subr.mxu0 0.0
        %2024 = vmatpush1.xpose.msra.mxu0 0.0
        %2025 = vmatprep.subr.mxu0 0.0
        %2026 = vmatpush1.xpose.msra.mxu0 0.0
        %2027 = vmatprep.subr.mxu0 0.0
        %2028 = vmatpush1.xpose.msra.mxu0 0.0
        %2029 = vmatprep.subr.mxu0 0.0
        %2030 = vmatpush1.xpose.msra.mxu0 0.0
        %2031 = vmatprep.subr.mxu0 0.0
        %2032 = vmatpush1.xpose.msra.mxu0 0.0
        %2033 = vmatprep.subr.mxu0 0.0
        %2034 = vmatpush1.xpose.msra.mxu0 0.0
        %2035 = vmatprep.subr.mxu0 0.0
        %2036 = vmatpush1.xpose.msra.mxu0 0.0
        %2037 = vmatprep.subr.mxu0 0.0
        %2038 = vmatpush1.xpose.msra.mxu0 0.0
        %2039 = vmatprep.subr.mxu0 0.0
        %2040 = vmatpush1.xpose.msra.mxu0 0.0
        %2041 = vmatprep.subr.mxu0 0.0
        %2042 = vmatpush1.xpose.msra.mxu0 0.0
        %2043 = vmatprep.subr.mxu0 0.0
        %2044 = vmatpush1.xpose.msra.mxu0 0.0
        %2045 = vmatprep.subr.mxu0 0.0
        %2046 = vmatpush1.xpose.msra.mxu0 0.0
        %2047 = vmatprep.subr.mxu0 0.0
        %2048 = vmatpush1.xpose.msra.mxu0 0.0
        %2049 = vmatprep.subr.mxu0 0.0
        %2050 = vmatpush1.xpose.msra.mxu0 0.0
        %2051 = vmatprep.subr.mxu0 0.0
        %2052 = vmatpush1.xpose.msra.mxu0 0.0
        %2053 = vmatprep.subr.mxu0 %v2008
        %2054 = vmatpush1.xpose.msra.mxu0 %v2007
        %2055 = vmatprep.subr.mxu0 0.0
        %2056 = vmatpush2.xpose.msra.mxu0 0.0
        %2057 = vmatprep.subr.mxu0 0.0
        %2058 = vmatpush2.xpose.msra.mxu0 0.0
        %2059 = vmatprep.subr.mxu0 0.0
        %2060 = vmatpush2.xpose.msra.mxu0 0.0
        %2061 = vmatprep.subr.mxu0 0.0
        %2062 = vmatpush2.xpose.msra.mxu0 0.0
        %2063 = vmatprep.subr.mxu0 0.0
        %2064 = vmatpush2.xpose.msra.mxu0 0.0
        %2065 = vmatprep.subr.mxu0 0.0
        %2066 = vmatpush2.xpose.msra.mxu0 0.0
        %2067 = vmatprep.subr.mxu0 0.0
        %2068 = vmatpush2.xpose.msra.mxu0 0.0
        %2069 = vmatprep.subr.mxu0 0.0
        %2070 = vmatpush2.xpose.msra.mxu0 0.0
        %2071 = vmatprep.subr.mxu0 0.0
        %2072 = vmatpush2.xpose.msra.mxu0 0.0
        %2073 = vmatprep.subr.mxu0 0.0
        %2074 = vmatpush2.xpose.msra.mxu0 0.0
        %2075 = vmatprep.subr.mxu0 0.0
        %2076 = vmatpush2.xpose.msra.mxu0 0.0
        %2077 = vmatprep.subr.mxu0 0.0
        %2078 = vmatpush2.xpose.msra.mxu0 0.0
        %2079 = vmatprep.subr.mxu0 0.0
        %2080 = vmatpush2.xpose.msra.mxu0 0.0
        %2081 = vmatprep.subr.mxu0 0.0
        %2082 = vmatpush2.xpose.msra.mxu0 0.0
        %2083 = vmatprep.subr.mxu0 0.0
        %2084 = vmatpush2.xpose.msra.mxu0 0.0
        %2085 = vmatprep.subr.mxu0 0.0
        %2086 = vmatpush2.xpose.msra.mxu0 0.0
        %2087 = vmatprep.mubr.f32.mxu0 %v2020
        %2088 = vmatmul.mubr.f32.gmra.mxu0 %v2016
        %v2089 = vpop.f32.mrf.mxu0
        %v2090 = vadd.f32 %v2011, %v2089
        %v2091 = vpop.f32.mrf.mxu0
        %2092 = vdwg.mxu0
        %v2093 = vmax.f32 %v2090, 0.0
        %vm2094 = vcmask 57344
        %2095 = vst.msk [vmem:[%s431] sm:$0x1] %vm2094, %v2093
        %s2096 = sand.u32 %s274, 1
        %s2097 = scalar_lea.sflag [#allocation5], %s2096
        %s2098 = sand.u32 %s274, 1
        %s2099 = scalar_lea.vmem [#allocation9], %s2098
        // Predicated region
        $region77: #{tpu_custom_call.1} parent=63 // pred_check
          %p2100 = pneg %p284
        $region78: #{tpu_custom_call.1} parent=63 // pred_check_branch
          %2102 = sbr.rel (%p2100) target = $region80
        $region79: #{tpu_custom_call.1} parent=63 // pred_region
          %s2104 = ssub.s32 16, 16
          %2105 = vsyncadd %s2097, %s2104
          %s2106 = smul.addr %s30, 16
          %s2107 = scalar_lea.hbm %s11, %s2106
          %s2109 = sshll.u32 %s2099, 4
          %s2110 = int_to_ptr.vmem [resolvable:$true] %s2109
          %2112 = dma.vmem_to_hbm [thread:$0]  %s2110, 16, %s2107, %s2097
        $region80: #{tpu_custom_call.1} parent=63 // pred_fallthru
          _
      $region64: #{tpu_custom_call.1} parent=5 // pred_fallthru
        _
      %p2113 = scmp.le.s32.totalorder 2, %s25
      // Predicated region
      $region81: #{tpu_custom_call.1} parent=5 // pred_check
        %p2114 = pneg %p2113
      $region82: #{tpu_custom_call.1} parent=5 // pred_check_branch
        %2116 = sbr.rel (%p2114) target = $region84
      $region83: #{tpu_custom_call.1} parent=5 // pred_region
        %s2117 = ssub.s32 %s25, 2
        // Predicated region
        $region85: #{tpu_custom_call.1} parent=83 // pred_check
          %p2118 = pneg %p290
        $region86: #{tpu_custom_call.1} parent=83 // pred_check_branch
          %2120 = sbr.rel (%p2118) target = $region88
        $region87: #{tpu_custom_call.1} parent=83 // pred_region
          %s2121 = sand.u32 %s275, 1
          %s2122 = scalar_lea.sflag [#allocation5], %s2121
          %s2123 = sand.u32 %s275, 1
          %s2124 = scalar_lea.vmem [#allocation9], %s2123
          %2125 = dma.done %s2122, 16
        $region88: #{tpu_custom_call.1} parent=83 // pred_fallthru
          _
      $region84: #{tpu_custom_call.1} parent=5 // pred_fallthru
        _
    $region6: #{tpu_custom_call.1} parent=1 // loop_footer
      %s29 = sadd.s32 1, %s25
    $region7: #{tpu_custom_call.1} parent=1 // loop_footer_branch
      %24 = sbr.rel target = $region3
    $region8: #{tpu_custom_call.1} parent=1 // loop_exit
      _
    %2126 = vsyncpa [#allocation4], 1
    %s2127 = scalar_lea.sflag [#allocation4], 1
    %2128 = vsyncpa %s2127, 1
    %2129 = vsyncpa [#allocation7], 1
    %2130 = vsyncpa [#allocation5], 1
    %s2131 = scalar_lea.sflag [#allocation5], 1
    %2132 = vsyncpa %s2131, 1

</llo_original>
